<compile_context>
chip_gen: v7x
topology: tpu7x:2x2x1
jax: 0.10.0
libtpu: 0.0.40
codegen_flags: <defaults>
</compile_context>

<pallas_src>
import jax
import jax.numpy as jnp
from jax import lax
from jax.experimental import pallas as pl
from jax.experimental.pallas import tpu as pltpu

C_IN, C1, C2, C3 = 4, 16, 32, 2


def _make_kernel(W):
    # Tap k = dy*3 + dx; flat-index shift of that tap within one image
    # (flat index p = b*H*W + h*W + w, so a (dy-1, dx-1) spatial offset is a
    # shift of (dy-1)*W + (dx-1) in p).
    shifts = tuple((dy - 1) * W + (dx - 1) for dy in range(3) for dx in range(3))

    def kernel(x_ref, m_ref, w1_ref, b1_ref, w2_ref, b2_ref, w3_ref, b3_ref,
               out_ref, p1, p2, p3, a1, a2):
        # x_ref : (4, M)        channel-major input slab, M = BT*H*W (lanes)
        # m_ref : (9, M)        0/1 border-validity mask per tap
        # wN    : (Cout, 9*Cin) transposed im2col weights
        # bN    : (Cout, 1)
        # out   : (2, M)        conv3 output (lane-dense)
        # p1/2/3: (9*Cin, M)    transposed patch matrices P^T
        # a1/a2 : (C1/C2, M)    relu1 / relu2 activations
        M = out_ref.shape[1]

        def im2col_t(src_ref, cin, dst_ref):
            # dst[k*cin:(k+1)*cin, :] = activation shifted by tap k, with the
            # SAME-padding border zeroed via the precomputed mask.  Lane roll
            # (XLU) + VPU multiply + full-lane-width sublane-slab store.
            for k, s in enumerate(shifts):
                src = src_ref[...]                       # (cin, M)
                if s == 0:                               # center tap: identity
                    dst_ref[k * cin:(k + 1) * cin, :] = src
                else:
                    tap = pltpu.roll(src, (-s) % M, axis=1)   # tap[p]=src[p+s]
                    dst_ref[k * cin:(k + 1) * cin, :] = tap * m_ref[k:k + 1, :]

        # ---- conv1 (4 -> 16) + ReLU: one (16,36) x (36,M) matmul -----------
        im2col_t(x_ref, C_IN, p1)
        h1 = jnp.dot(w1_ref[...], p1[...], preferred_element_type=jnp.float32)
        a1[...] = jnp.maximum(h1 + b1_ref[...], 0.0)

        # ---- conv2 (16 -> 32) + ReLU: one (32,144) x (144,M) matmul --------
        im2col_t(a1, C1, p2)
        h2 = jnp.dot(w2_ref[...], p2[...], preferred_element_type=jnp.float32)
        a2[...] = jnp.maximum(h2 + b2_ref[...], 0.0)

        # ---- conv3 (32 -> 2): one (2,288) x (288,M) matmul, lane-dense out -
        im2col_t(a2, C2, p3)
        h3 = jnp.dot(w3_ref[...], p3[...], preferred_element_type=jnp.float32)
        out_ref[...] = h3 + b3_ref[...]

    return kernel


def _pick_batch_tile(b, hw, cap=8):
    """Batch elements folded per grid step.

    Prefers the largest divisor of b (<= cap) whose lane extent bt*hw is a
    multiple of 128 AND leaves >= 2 grid steps (so v7x's two TensorCores both
    get work).  Falls back to a single full-batch block otherwise.
    """
    cands = [bt for bt in range(1, min(b, cap) + 1)
             if b % bt == 0 and (bt * hw) % 128 == 0]
    multi = [bt for bt in cands if b // bt >= 2]
    if multi:
        return max(multi)
    if cands:
        return max(cands)
    return b   # single block covering the full array (no tiling constraint)


def _tap_masks(bt, h, w):
    """(9, bt*h*w) float32 validity masks: 1 where tap (dy,dx) reads inside
    the image, 0 where it would read the SAME-padding border."""
    p = jnp.arange(bt * h * w)
    hh = (p // w) % h
    ww = p % w
    rows = []
    for dy in range(3):
        for dx in range(3):
            valid = ((hh + dy - 1 >= 0) & (hh + dy - 1 < h) &
                     (ww + dx - 1 >= 0) & (ww + dx - 1 < w))
            rows.append(valid.astype(jnp.float32))
    return jnp.stack(rows, axis=0)


def finetune_flow_2(x_1, x_2, params):
    """x_1, x_2: (B, H, W, 2) float32 NHWC.  Returns (B, H, W, 2) float32."""
    w1, b1, w2, b2, w3, b3 = params          # HWIO weights (3, 3, Cin, Cout)
    B, H, W, _ = x_1.shape
    HW = H * W
    BT = _pick_batch_tile(B, HW)
    G = B // BT
    M = BT * HW

    # Channel-major, lane-dense input slab (4, B*H*W); the cat and the tiny
    # NHWC->CHW transpose are done by XLA in the wrapper.
    x = jnp.concatenate([x_1, x_2], axis=-1)                 # (B, H, W, 4)
    x = x.transpose(3, 0, 1, 2).reshape(C_IN, B * HW)

    masks = _tap_masks(BT, H, W)                             # (9, M)

    # HWIO -> transposed im2col weights (Cout, 9*Cin); row k*Cin+c of the
    # patch matrix corresponds to tap k = dy*3+dx, channel c.
    w1t = w1.reshape(9 * C_IN, C1).T
    w2t = w2.reshape(9 * C1, C2).T
    w3t = w3.reshape(9 * C2, C3).T
    b1c = b1.reshape(C1, 1)
    b2c = b2.reshape(C2, 1)
    b3c = b3.reshape(C3, 1)

    out = pl.pallas_call(
        _make_kernel(W),
        out_shape=jax.ShapeDtypeStruct((C3, B * HW), jnp.float32),
        grid_spec=pltpu.PrefetchScalarGridSpec(
            num_scalar_prefetch=0,
            grid=(G,),
            in_specs=[
                pl.BlockSpec((C_IN, M), lambda g: (0, g)),        # input slab
                pl.BlockSpec((9, M), lambda g: (0, 0)),           # tap masks
                pl.BlockSpec((C1, 9 * C_IN), lambda g: (0, 0)),   # W1^T
                pl.BlockSpec((C1, 1), lambda g: (0, 0)),          # b1
                pl.BlockSpec((C2, 9 * C1), lambda g: (0, 0)),     # W2^T
                pl.BlockSpec((C2, 1), lambda g: (0, 0)),          # b2
                pl.BlockSpec((C3, 9 * C2), lambda g: (0, 0)),     # W3^T
                pl.BlockSpec((C3, 1), lambda g: (0, 0)),          # b3
            ],
            out_specs=pl.BlockSpec((C3, M), lambda g: (0, g)),
            scratch_shapes=[
                pltpu.VMEM((9 * C_IN, M), jnp.float32),   # P^T conv1
                pltpu.VMEM((9 * C1, M), jnp.float32),     # P^T conv2
                pltpu.VMEM((9 * C2, M), jnp.float32),     # P^T conv3
                pltpu.VMEM((C1, M), jnp.float32),         # relu1 activation
                pltpu.VMEM((C2, M), jnp.float32),         # relu2 activation
            ],
        ),
        compiler_params=pltpu.CompilerParams(
            dimension_semantics=("parallel",),   # batch tiles are independent
        ),
    )(x, masks, w1t, b1c, w2t, b2c, w3t, b3c)

    # (2, B*H*W) -> (B, H, W, 2): tiny final transpose done by XLA.
    return out.reshape(C3, B, H, W).transpose(1, 2, 3, 0)


def _init_params(key):
    """Deterministic synthetic weights, HWIO layout (3, 3, Cin, Cout)."""
    ks = jax.random.split(key, 6)

    def conv_w(k, cin, cout):
        scale = 1.0 / jnp.sqrt(9.0 * cin)
        return jax.random.normal(k, (3, 3, cin, cout), jnp.float32) * scale

    w1 = conv_w(ks[0], C_IN, C1)
    b1 = jax.random.normal(ks[1], (C1,), jnp.float32) * 0.1
    w2 = conv_w(ks[2], C1, C2)
    b2 = jax.random.normal(ks[3], (C2,), jnp.float32) * 0.1
    w3 = conv_w(ks[4], C2, C3)
    b3 = jax.random.normal(ks[5], (C3,), jnp.float32) * 0.1
    return (w1, b1, w2, b2, w3, b3)


def _reference(x_1, x_2, params):
    """Pure-JAX (XLA) reference of the PyTorch forward, NHWC/HWIO."""
    w1, b1, w2, b2, w3, b3 = params
    x = jnp.concatenate([x_1, x_2], axis=-1)
    dn = ("NHWC", "HWIO", "NHWC")
    x = jax.nn.relu(lax.conv_general_dilated(x, w1, (1, 1), "SAME",
                                             dimension_numbers=dn) + b1)
    x = jax.nn.relu(lax.conv_general_dilated(x, w2, (1, 1), "SAME",
                                             dimension_numbers=dn) + b2)
    x = lax.conv_general_dilated(x, w3, (1, 1), "SAME",
                                 dimension_numbers=dn) + b3
    return x


if __name__ == "__main__":
    key = jax.random.PRNGKey(0)
    k_p, k_x1, k_x2 = jax.random.split(key, 3)

    B, H, W = 2, 16, 16
    x_1 = jax.random.normal(k_x1, (B, H, W, 2), jnp.float32)
    x_2 = jax.random.normal(k_x2, (B, H, W, 2), jnp.float32)
    params = _init_params(k_p)

    out = jax.block_until_ready(finetune_flow_2(x_1, x_2, params))
    ref = jax.block_until_ready(_reference(x_1, x_2, params))

    assert out.shape == (B, H, W, 2) and out.dtype == jnp.float32
    err = jnp.max(jnp.abs(out - ref))
    assert jnp.allclose(out, ref, atol=1e-4, rtol=1e-4), f"max abs err {err}"

    print("KERNEL_OK")
</pallas_src>

<mosaic_0001>
module attributes {stable_mosaic.version = 11 : i64} {
  func.func @kernel(%arg0: i32, %arg1: memref<4x256xf32, #tpu.memory_space<vmem>>, %arg2: memref<9x256xf32, #tpu.memory_space<vmem>>, %arg3: memref<16x36xf32, #tpu.memory_space<vmem>>, %arg4: memref<16x1xf32, #tpu.memory_space<vmem>>, %arg5: memref<32x144xf32, #tpu.memory_space<vmem>>, %arg6: memref<32x1xf32, #tpu.memory_space<vmem>>, %arg7: memref<2x288xf32, #tpu.memory_space<vmem>>, %arg8: memref<2x1xf32, #tpu.memory_space<vmem>>, %arg9: memref<2x256xf32, #tpu.memory_space<vmem>>, %arg10: memref<36x256xf32, #tpu.memory_space<vmem>>, %arg11: memref<144x256xf32, #tpu.memory_space<vmem>>, %arg12: memref<288x256xf32, #tpu.memory_space<vmem>>, %arg13: memref<16x256xf32, #tpu.memory_space<vmem>>, %arg14: memref<32x256xf32, #tpu.memory_space<vmem>>) attributes {dimension_semantics = [#tpu.dimension_semantics<parallel>], iteration_bounds = array<i64: 2>, scalar_prefetch = 0 : i64, scratch_operands = 5 : i64, tpu.core_type = #tpu.core_type<tc>, window_params = [{transform_indices = @transform_0, window_bounds = array<i64: 4, 256>}, {pipeline_mode = #tpu.pipeline_mode<synchronous>, transform_indices = @transform_1, window_bounds = array<i64: 9, 256>}, {pipeline_mode = #tpu.pipeline_mode<synchronous>, transform_indices = @transform_2, window_bounds = array<i64: 16, 36>}, {pipeline_mode = #tpu.pipeline_mode<synchronous>, transform_indices = @transform_3, window_bounds = array<i64: 16, 1>}, {pipeline_mode = #tpu.pipeline_mode<synchronous>, transform_indices = @transform_4, window_bounds = array<i64: 32, 144>}, {pipeline_mode = #tpu.pipeline_mode<synchronous>, transform_indices = @transform_5, window_bounds = array<i64: 32, 1>}, {pipeline_mode = #tpu.pipeline_mode<synchronous>, transform_indices = @transform_6, window_bounds = array<i64: 2, 288>}, {pipeline_mode = #tpu.pipeline_mode<synchronous>, transform_indices = @transform_7, window_bounds = array<i64: 2, 1>}, {transform_indices = @transform_8, window_bounds = array<i64: 2, 256>}]} {
    %c0 = arith.constant 0 : index
    %c0_0 = arith.constant 0 : index
    %0 = vector.load %arg1[%c0, %c0_0] : memref<4x256xf32, #tpu.memory_space<vmem>>, vector<4x256xf32>
    %c17_i32 = arith.constant 17 : i32
    %1 = tpu.dynamic_rotate %0 by %c17_i32 dim 1 : vector<4x256xf32>, i32 -> vector<4x256xf32>
    %c0_1 = arith.constant 0 : index
    %c0_2 = arith.constant 0 : index
    %2 = vector.load %arg2[%c0_1, %c0_2] : memref<9x256xf32, #tpu.memory_space<vmem>>, vector<1x256xf32>
    %3 = vector.broadcast %2 : vector<1x256xf32> to vector<4x256xf32>
    %4 = arith.mulf %1, %3 : vector<4x256xf32>
    %c0_3 = arith.constant 0 : index
    %c0_4 = arith.constant 0 : index
    %5 = vector.load %arg10[%c0_3, %c0_4] : memref<36x256xf32, #tpu.memory_space<vmem>>, vector<4x256xf32>
    tpu.vector_store %arg10[%c0_3, %c0_4], %4 {strides = array<i32>} : memref<36x256xf32, #tpu.memory_space<vmem>>, vector<4x256xf32>,
    %c0_5 = arith.constant 0 : index
    %c0_6 = arith.constant 0 : index
    %6 = vector.load %arg1[%c0_5, %c0_6] : memref<4x256xf32, #tpu.memory_space<vmem>>, vector<4x256xf32>
    %c16_i32 = arith.constant 16 : i32
    %7 = tpu.dynamic_rotate %6 by %c16_i32 dim 1 : vector<4x256xf32>, i32 -> vector<4x256xf32>
    %c1 = arith.constant 1 : index
    %c0_7 = arith.constant 0 : index
    %8 = vector.load %arg2[%c1, %c0_7] : memref<9x256xf32, #tpu.memory_space<vmem>>, vector<1x256xf32>
    %9 = vector.broadcast %8 : vector<1x256xf32> to vector<4x256xf32>
    %10 = arith.mulf %7, %9 : vector<4x256xf32>
    %c4 = arith.constant 4 : index
    %c0_8 = arith.constant 0 : index
    %11 = vector.load %arg10[%c4, %c0_8] : memref<36x256xf32, #tpu.memory_space<vmem>>, vector<4x256xf32>
    tpu.vector_store %arg10[%c4, %c0_8], %10 {strides = array<i32>} : memref<36x256xf32, #tpu.memory_space<vmem>>, vector<4x256xf32>,
    %c0_9 = arith.constant 0 : index
    %c0_10 = arith.constant 0 : index
    %12 = vector.load %arg1[%c0_9, %c0_10] : memref<4x256xf32, #tpu.memory_space<vmem>>, vector<4x256xf32>
    %c15_i32 = arith.constant 15 : i32
    %13 = tpu.dynamic_rotate %12 by %c15_i32 dim 1 : vector<4x256xf32>, i32 -> vector<4x256xf32>
    %c2 = arith.constant 2 : index
    %c0_11 = arith.constant 0 : index
    %14 = vector.load %arg2[%c2, %c0_11] : memref<9x256xf32, #tpu.memory_space<vmem>>, vector<1x256xf32>
    %15 = vector.broadcast %14 : vector<1x256xf32> to vector<4x256xf32>
    %16 = arith.mulf %13, %15 : vector<4x256xf32>
    %c8 = arith.constant 8 : index
    %c0_12 = arith.constant 0 : index
    %17 = vector.load %arg10[%c8, %c0_12] : memref<36x256xf32, #tpu.memory_space<vmem>>, vector<4x256xf32>
    tpu.vector_store %arg10[%c8, %c0_12], %16 {strides = array<i32>} : memref<36x256xf32, #tpu.memory_space<vmem>>, vector<4x256xf32>,
    %c0_13 = arith.constant 0 : index
    %c0_14 = arith.constant 0 : index
    %18 = vector.load %arg1[%c0_13, %c0_14] : memref<4x256xf32, #tpu.memory_space<vmem>>, vector<4x256xf32>
    %c1_i32 = arith.constant 1 : i32
    %19 = tpu.dynamic_rotate %18 by %c1_i32 dim 1 : vector<4x256xf32>, i32 -> vector<4x256xf32>
    %c3 = arith.constant 3 : index
    %c0_15 = arith.constant 0 : index
    %20 = vector.load %arg2[%c3, %c0_15] : memref<9x256xf32, #tpu.memory_space<vmem>>, vector<1x256xf32>
    %21 = vector.broadcast %20 : vector<1x256xf32> to vector<4x256xf32>
    %22 = arith.mulf %19, %21 : vector<4x256xf32>
    %c12 = arith.constant 12 : index
    %c0_16 = arith.constant 0 : index
    %23 = vector.load %arg10[%c12, %c0_16] : memref<36x256xf32, #tpu.memory_space<vmem>>, vector<4x256xf32>
    tpu.vector_store %arg10[%c12, %c0_16], %22 {strides = array<i32>} : memref<36x256xf32, #tpu.memory_space<vmem>>, vector<4x256xf32>,
    %c0_17 = arith.constant 0 : index
    %c0_18 = arith.constant 0 : index
    %24 = vector.load %arg1[%c0_17, %c0_18] : memref<4x256xf32, #tpu.memory_space<vmem>>, vector<4x256xf32>
    %c16 = arith.constant 16 : index
    %c0_19 = arith.constant 0 : index
    %25 = vector.load %arg10[%c16, %c0_19] : memref<36x256xf32, #tpu.memory_space<vmem>>, vector<4x256xf32>
    tpu.vector_store %arg10[%c16, %c0_19], %24 {strides = array<i32>} : memref<36x256xf32, #tpu.memory_space<vmem>>, vector<4x256xf32>,
    %c0_20 = arith.constant 0 : index
    %c0_21 = arith.constant 0 : index
    %26 = vector.load %arg1[%c0_20, %c0_21] : memref<4x256xf32, #tpu.memory_space<vmem>>, vector<4x256xf32>
    %c255_i32 = arith.constant 255 : i32
    %27 = tpu.dynamic_rotate %26 by %c255_i32 dim 1 : vector<4x256xf32>, i32 -> vector<4x256xf32>
    %c5 = arith.constant 5 : index
    %c0_22 = arith.constant 0 : index
    %28 = vector.load %arg2[%c5, %c0_22] : memref<9x256xf32, #tpu.memory_space<vmem>>, vector<1x256xf32>
    %29 = vector.broadcast %28 : vector<1x256xf32> to vector<4x256xf32>
    %30 = arith.mulf %27, %29 : vector<4x256xf32>
    %c20 = arith.constant 20 : index
    %c0_23 = arith.constant 0 : index
    %31 = vector.load %arg10[%c20, %c0_23] : memref<36x256xf32, #tpu.memory_space<vmem>>, vector<4x256xf32>
    tpu.vector_store %arg10[%c20, %c0_23], %30 {strides = array<i32>} : memref<36x256xf32, #tpu.memory_space<vmem>>, vector<4x256xf32>,
    %c0_24 = arith.constant 0 : index
    %c0_25 = arith.constant 0 : index
    %32 = vector.load %arg1[%c0_24, %c0_25] : memref<4x256xf32, #tpu.memory_space<vmem>>, vector<4x256xf32>
    %c241_i32 = arith.constant 241 : i32
    %33 = tpu.dynamic_rotate %32 by %c241_i32 dim 1 : vector<4x256xf32>, i32 -> vector<4x256xf32>
    %c6 = arith.constant 6 : index
    %c0_26 = arith.constant 0 : index
    %34 = vector.load %arg2[%c6, %c0_26] : memref<9x256xf32, #tpu.memory_space<vmem>>, vector<1x256xf32>
    %35 = vector.broadcast %34 : vector<1x256xf32> to vector<4x256xf32>
    %36 = arith.mulf %33, %35 : vector<4x256xf32>
    %c24 = arith.constant 24 : index
    %c0_27 = arith.constant 0 : index
    %37 = vector.load %arg10[%c24, %c0_27] : memref<36x256xf32, #tpu.memory_space<vmem>>, vector<4x256xf32>
    tpu.vector_store %arg10[%c24, %c0_27], %36 {strides = array<i32>} : memref<36x256xf32, #tpu.memory_space<vmem>>, vector<4x256xf32>,
    %c0_28 = arith.constant 0 : index
    %c0_29 = arith.constant 0 : index
    %38 = vector.load %arg1[%c0_28, %c0_29] : memref<4x256xf32, #tpu.memory_space<vmem>>, vector<4x256xf32>
    %c240_i32 = arith.constant 240 : i32
    %39 = tpu.dynamic_rotate %38 by %c240_i32 dim 1 : vector<4x256xf32>, i32 -> vector<4x256xf32>
    %c7 = arith.constant 7 : index
    %c0_30 = arith.constant 0 : index
    %40 = vector.load %arg2[%c7, %c0_30] : memref<9x256xf32, #tpu.memory_space<vmem>>, vector<1x256xf32>
    %41 = vector.broadcast %40 : vector<1x256xf32> to vector<4x256xf32>
    %42 = arith.mulf %39, %41 : vector<4x256xf32>
    %c28 = arith.constant 28 : index
    %c0_31 = arith.constant 0 : index
    %43 = vector.load %arg10[%c28, %c0_31] : memref<36x256xf32, #tpu.memory_space<vmem>>, vector<4x256xf32>
    tpu.vector_store %arg10[%c28, %c0_31], %42 {strides = array<i32>} : memref<36x256xf32, #tpu.memory_space<vmem>>, vector<4x256xf32>,
    %c0_32 = arith.constant 0 : index
    %c0_33 = arith.constant 0 : index
    %44 = vector.load %arg1[%c0_32, %c0_33] : memref<4x256xf32, #tpu.memory_space<vmem>>, vector<4x256xf32>
    %c239_i32 = arith.constant 239 : i32
    %45 = tpu.dynamic_rotate %44 by %c239_i32 dim 1 : vector<4x256xf32>, i32 -> vector<4x256xf32>
    %c8_34 = arith.constant 8 : index
    %c0_35 = arith.constant 0 : index
    %46 = vector.load %arg2[%c8_34, %c0_35] : memref<9x256xf32, #tpu.memory_space<vmem>>, vector<1x256xf32>
    %47 = vector.broadcast %46 : vector<1x256xf32> to vector<4x256xf32>
    %48 = arith.mulf %45, %47 : vector<4x256xf32>
    %c32 = arith.constant 32 : index
    %c0_36 = arith.constant 0 : index
    %49 = vector.load %arg10[%c32, %c0_36] : memref<36x256xf32, #tpu.memory_space<vmem>>, vector<4x256xf32>
    tpu.vector_store %arg10[%c32, %c0_36], %48 {strides = array<i32>} : memref<36x256xf32, #tpu.memory_space<vmem>>, vector<4x256xf32>,
    %c0_37 = arith.constant 0 : index
    %c0_38 = arith.constant 0 : index
    %50 = vector.load %arg3[%c0_37, %c0_38] : memref<16x36xf32, #tpu.memory_space<vmem>>, vector<16x36xf32>
    %c0_39 = arith.constant 0 : index
    %c0_40 = arith.constant 0 : index
    %51 = vector.load %arg10[%c0_39, %c0_40] : memref<36x256xf32, #tpu.memory_space<vmem>>, vector<36x256xf32>
    %cst = arith.constant dense<0.000000e+00> : vector<16x256xf32>
    %52 = tpu.matmul %50, %51, %cst {dimension_numbers = #tpu.dot_dimension_numbers<[1], [0], [0], [1], [0, 0, 1, 1], [], []>} : vector<16x36xf32>, vector<36x256xf32>, vector<16x256xf32> -> vector<16x256xf32>
    %c0_41 = arith.constant 0 : index
    %c0_42 = arith.constant 0 : index
    %53 = vector.load %arg4[%c0_41, %c0_42] : memref<16x1xf32, #tpu.memory_space<vmem>>, vector<16x1xf32>
    %54 = vector.broadcast %53 : vector<16x1xf32> to vector<16x256xf32>
    %55 = arith.addf %52, %54 : vector<16x256xf32>
    %cst_43 = arith.constant 0.000000e+00 : f32
    %56 = vector.broadcast %cst_43 : f32 to vector<16x256xf32>
    %57 = arith.maximumf %55, %56 : vector<16x256xf32>
    %c0_44 = arith.constant 0 : index
    %c0_45 = arith.constant 0 : index
    %58 = vector.load %arg13[%c0_44, %c0_45] : memref<16x256xf32, #tpu.memory_space<vmem>>, vector<16x256xf32>
    tpu.vector_store %arg13[%c0_44, %c0_45], %57 {strides = array<i32>} : memref<16x256xf32, #tpu.memory_space<vmem>>, vector<16x256xf32>,
    %c0_46 = arith.constant 0 : index
    %c0_47 = arith.constant 0 : index
    %59 = vector.load %arg13[%c0_46, %c0_47] : memref<16x256xf32, #tpu.memory_space<vmem>>, vector<16x256xf32>
    %c17_i32_48 = arith.constant 17 : i32
    %60 = tpu.dynamic_rotate %59 by %c17_i32_48 dim 1 : vector<16x256xf32>, i32 -> vector<16x256xf32>
    %c0_49 = arith.constant 0 : index
    %c0_50 = arith.constant 0 : index
    %61 = vector.load %arg2[%c0_49, %c0_50] : memref<9x256xf32, #tpu.memory_space<vmem>>, vector<1x256xf32>
    %62 = vector.broadcast %61 : vector<1x256xf32> to vector<16x256xf32>
    %63 = arith.mulf %60, %62 : vector<16x256xf32>
    %c0_51 = arith.constant 0 : index
    %c0_52 = arith.constant 0 : index
    %64 = vector.load %arg11[%c0_51, %c0_52] : memref<144x256xf32, #tpu.memory_space<vmem>>, vector<16x256xf32>
    tpu.vector_store %arg11[%c0_51, %c0_52], %63 {strides = array<i32>} : memref<144x256xf32, #tpu.memory_space<vmem>>, vector<16x256xf32>,
    %c0_53 = arith.constant 0 : index
    %c0_54 = arith.constant 0 : index
    %65 = vector.load %arg13[%c0_53, %c0_54] : memref<16x256xf32, #tpu.memory_space<vmem>>, vector<16x256xf32>
    %c16_i32_55 = arith.constant 16 : i32
    %66 = tpu.dynamic_rotate %65 by %c16_i32_55 dim 1 : vector<16x256xf32>, i32 -> vector<16x256xf32>
    %c1_56 = arith.constant 1 : index
    %c0_57 = arith.constant 0 : index
    %67 = vector.load %arg2[%c1_56, %c0_57] : memref<9x256xf32, #tpu.memory_space<vmem>>, vector<1x256xf32>
    %68 = vector.broadcast %67 : vector<1x256xf32> to vector<16x256xf32>
    %69 = arith.mulf %66, %68 : vector<16x256xf32>
    %c16_58 = arith.constant 16 : index
    %c0_59 = arith.constant 0 : index
    %70 = vector.load %arg11[%c16_58, %c0_59] : memref<144x256xf32, #tpu.memory_space<vmem>>, vector<16x256xf32>
    tpu.vector_store %arg11[%c16_58, %c0_59], %69 {strides = array<i32>} : memref<144x256xf32, #tpu.memory_space<vmem>>, vector<16x256xf32>,
    %c0_60 = arith.constant 0 : index
    %c0_61 = arith.constant 0 : index
    %71 = vector.load %arg13[%c0_60, %c0_61] : memref<16x256xf32, #tpu.memory_space<vmem>>, vector<16x256xf32>
    %c15_i32_62 = arith.constant 15 : i32
    %72 = tpu.dynamic_rotate %71 by %c15_i32_62 dim 1 : vector<16x256xf32>, i32 -> vector<16x256xf32>
    %c2_63 = arith.constant 2 : index
    %c0_64 = arith.constant 0 : index
    %73 = vector.load %arg2[%c2_63, %c0_64] : memref<9x256xf32, #tpu.memory_space<vmem>>, vector<1x256xf32>
    %74 = vector.broadcast %73 : vector<1x256xf32> to vector<16x256xf32>
    %75 = arith.mulf %72, %74 : vector<16x256xf32>
    %c32_65 = arith.constant 32 : index
    %c0_66 = arith.constant 0 : index
    %76 = vector.load %arg11[%c32_65, %c0_66] : memref<144x256xf32, #tpu.memory_space<vmem>>, vector<16x256xf32>
    tpu.vector_store %arg11[%c32_65, %c0_66], %75 {strides = array<i32>} : memref<144x256xf32, #tpu.memory_space<vmem>>, vector<16x256xf32>,
    %c0_67 = arith.constant 0 : index
    %c0_68 = arith.constant 0 : index
    %77 = vector.load %arg13[%c0_67, %c0_68] : memref<16x256xf32, #tpu.memory_space<vmem>>, vector<16x256xf32>
    %c1_i32_69 = arith.constant 1 : i32
    %78 = tpu.dynamic_rotate %77 by %c1_i32_69 dim 1 : vector<16x256xf32>, i32 -> vector<16x256xf32>
    %c3_70 = arith.constant 3 : index
    %c0_71 = arith.constant 0 : index
    %79 = vector.load %arg2[%c3_70, %c0_71] : memref<9x256xf32, #tpu.memory_space<vmem>>, vector<1x256xf32>
    %80 = vector.broadcast %79 : vector<1x256xf32> to vector<16x256xf32>
    %81 = arith.mulf %78, %80 : vector<16x256xf32>
    %c48 = arith.constant 48 : index
    %c0_72 = arith.constant 0 : index
    %82 = vector.load %arg11[%c48, %c0_72] : memref<144x256xf32, #tpu.memory_space<vmem>>, vector<16x256xf32>
    tpu.vector_store %arg11[%c48, %c0_72], %81 {strides = array<i32>} : memref<144x256xf32, #tpu.memory_space<vmem>>, vector<16x256xf32>,
    %c0_73 = arith.constant 0 : index
    %c0_74 = arith.constant 0 : index
    %83 = vector.load %arg13[%c0_73, %c0_74] : memref<16x256xf32, #tpu.memory_space<vmem>>, vector<16x256xf32>
    %c64 = arith.constant 64 : index
    %c0_75 = arith.constant 0 : index
    %84 = vector.load %arg11[%c64, %c0_75] : memref<144x256xf32, #tpu.memory_space<vmem>>, vector<16x256xf32>
    tpu.vector_store %arg11[%c64, %c0_75], %83 {strides = array<i32>} : memref<144x256xf32, #tpu.memory_space<vmem>>, vector<16x256xf32>,
    %c0_76 = arith.constant 0 : index
    %c0_77 = arith.constant 0 : index
    %85 = vector.load %arg13[%c0_76, %c0_77] : memref<16x256xf32, #tpu.memory_space<vmem>>, vector<16x256xf32>
    %c255_i32_78 = arith.constant 255 : i32
    %86 = tpu.dynamic_rotate %85 by %c255_i32_78 dim 1 : vector<16x256xf32>, i32 -> vector<16x256xf32>
    %c5_79 = arith.constant 5 : index
    %c0_80 = arith.constant 0 : index
    %87 = vector.load %arg2[%c5_79, %c0_80] : memref<9x256xf32, #tpu.memory_space<vmem>>, vector<1x256xf32>
    %88 = vector.broadcast %87 : vector<1x256xf32> to vector<16x256xf32>
    %89 = arith.mulf %86, %88 : vector<16x256xf32>
    %c80 = arith.constant 80 : index
    %c0_81 = arith.constant 0 : index
    %90 = vector.load %arg11[%c80, %c0_81] : memref<144x256xf32, #tpu.memory_space<vmem>>, vector<16x256xf32>
    tpu.vector_store %arg11[%c80, %c0_81], %89 {strides = array<i32>} : memref<144x256xf32, #tpu.memory_space<vmem>>, vector<16x256xf32>,
    %c0_82 = arith.constant 0 : index
    %c0_83 = arith.constant 0 : index
    %91 = vector.load %arg13[%c0_82, %c0_83] : memref<16x256xf32, #tpu.memory_space<vmem>>, vector<16x256xf32>
    %c241_i32_84 = arith.constant 241 : i32
    %92 = tpu.dynamic_rotate %91 by %c241_i32_84 dim 1 : vector<16x256xf32>, i32 -> vector<16x256xf32>
    %c6_85 = arith.constant 6 : index
    %c0_86 = arith.constant 0 : index
    %93 = vector.load %arg2[%c6_85, %c0_86] : memref<9x256xf32, #tpu.memory_space<vmem>>, vector<1x256xf32>
    %94 = vector.broadcast %93 : vector<1x256xf32> to vector<16x256xf32>
    %95 = arith.mulf %92, %94 : vector<16x256xf32>
    %c96 = arith.constant 96 : index
    %c0_87 = arith.constant 0 : index
    %96 = vector.load %arg11[%c96, %c0_87] : memref<144x256xf32, #tpu.memory_space<vmem>>, vector<16x256xf32>
    tpu.vector_store %arg11[%c96, %c0_87], %95 {strides = array<i32>} : memref<144x256xf32, #tpu.memory_space<vmem>>, vector<16x256xf32>,
    %c0_88 = arith.constant 0 : index
    %c0_89 = arith.constant 0 : index
    %97 = vector.load %arg13[%c0_88, %c0_89] : memref<16x256xf32, #tpu.memory_space<vmem>>, vector<16x256xf32>
    %c240_i32_90 = arith.constant 240 : i32
    %98 = tpu.dynamic_rotate %97 by %c240_i32_90 dim 1 : vector<16x256xf32>, i32 -> vector<16x256xf32>
    %c7_91 = arith.constant 7 : index
    %c0_92 = arith.constant 0 : index
    %99 = vector.load %arg2[%c7_91, %c0_92] : memref<9x256xf32, #tpu.memory_space<vmem>>, vector<1x256xf32>
    %100 = vector.broadcast %99 : vector<1x256xf32> to vector<16x256xf32>
    %101 = arith.mulf %98, %100 : vector<16x256xf32>
    %c112 = arith.constant 112 : index
    %c0_93 = arith.constant 0 : index
    %102 = vector.load %arg11[%c112, %c0_93] : memref<144x256xf32, #tpu.memory_space<vmem>>, vector<16x256xf32>
    tpu.vector_store %arg11[%c112, %c0_93], %101 {strides = array<i32>} : memref<144x256xf32, #tpu.memory_space<vmem>>, vector<16x256xf32>,
    %c0_94 = arith.constant 0 : index
    %c0_95 = arith.constant 0 : index
    %103 = vector.load %arg13[%c0_94, %c0_95] : memref<16x256xf32, #tpu.memory_space<vmem>>, vector<16x256xf32>
    %c239_i32_96 = arith.constant 239 : i32
    %104 = tpu.dynamic_rotate %103 by %c239_i32_96 dim 1 : vector<16x256xf32>, i32 -> vector<16x256xf32>
    %c8_97 = arith.constant 8 : index
    %c0_98 = arith.constant 0 : index
    %105 = vector.load %arg2[%c8_97, %c0_98] : memref<9x256xf32, #tpu.memory_space<vmem>>, vector<1x256xf32>
    %106 = vector.broadcast %105 : vector<1x256xf32> to vector<16x256xf32>
    %107 = arith.mulf %104, %106 : vector<16x256xf32>
    %c128 = arith.constant 128 : index
    %c0_99 = arith.constant 0 : index
    %108 = vector.load %arg11[%c128, %c0_99] : memref<144x256xf32, #tpu.memory_space<vmem>>, vector<16x256xf32>
    tpu.vector_store %arg11[%c128, %c0_99], %107 {strides = array<i32>} : memref<144x256xf32, #tpu.memory_space<vmem>>, vector<16x256xf32>,
    %c0_100 = arith.constant 0 : index
    %c0_101 = arith.constant 0 : index
    %109 = vector.load %arg5[%c0_100, %c0_101] : memref<32x144xf32, #tpu.memory_space<vmem>>, vector<32x144xf32>
    %c0_102 = arith.constant 0 : index
    %c0_103 = arith.constant 0 : index
    %110 = vector.load %arg11[%c0_102, %c0_103] : memref<144x256xf32, #tpu.memory_space<vmem>>, vector<144x256xf32>
    %cst_104 = arith.constant dense<0.000000e+00> : vector<32x256xf32>
    %111 = tpu.matmul %109, %110, %cst_104 {dimension_numbers = #tpu.dot_dimension_numbers<[1], [0], [0], [1], [0, 0, 1, 1], [], []>} : vector<32x144xf32>, vector<144x256xf32>, vector<32x256xf32> -> vector<32x256xf32>
    %c0_105 = arith.constant 0 : index
    %c0_106 = arith.constant 0 : index
    %112 = vector.load %arg6[%c0_105, %c0_106] : memref<32x1xf32, #tpu.memory_space<vmem>>, vector<32x1xf32>
    %113 = vector.broadcast %112 : vector<32x1xf32> to vector<32x256xf32>
    %114 = arith.addf %111, %113 : vector<32x256xf32>
    %cst_107 = arith.constant 0.000000e+00 : f32
    %115 = vector.broadcast %cst_107 : f32 to vector<32x256xf32>
    %116 = arith.maximumf %114, %115 : vector<32x256xf32>
    %c0_108 = arith.constant 0 : index
    %c0_109 = arith.constant 0 : index
    %117 = vector.load %arg14[%c0_108, %c0_109] : memref<32x256xf32, #tpu.memory_space<vmem>>, vector<32x256xf32>
    tpu.vector_store %arg14[%c0_108, %c0_109], %116 {strides = array<i32>} : memref<32x256xf32, #tpu.memory_space<vmem>>, vector<32x256xf32>,
    %c0_110 = arith.constant 0 : index
    %c0_111 = arith.constant 0 : index
    %118 = vector.load %arg14[%c0_110, %c0_111] : memref<32x256xf32, #tpu.memory_space<vmem>>, vector<32x256xf32>
    %c17_i32_112 = arith.constant 17 : i32
    %119 = tpu.dynamic_rotate %118 by %c17_i32_112 dim 1 : vector<32x256xf32>, i32 -> vector<32x256xf32>
    %c0_113 = arith.constant 0 : index
    %c0_114 = arith.constant 0 : index
    %120 = vector.load %arg2[%c0_113, %c0_114] : memref<9x256xf32, #tpu.memory_space<vmem>>, vector<1x256xf32>
    %121 = vector.broadcast %120 : vector<1x256xf32> to vector<32x256xf32>
    %122 = arith.mulf %119, %121 : vector<32x256xf32>
    %c0_115 = arith.constant 0 : index
    %c0_116 = arith.constant 0 : index
    %123 = vector.load %arg12[%c0_115, %c0_116] : memref<288x256xf32, #tpu.memory_space<vmem>>, vector<32x256xf32>
    tpu.vector_store %arg12[%c0_115, %c0_116], %122 {strides = array<i32>} : memref<288x256xf32, #tpu.memory_space<vmem>>, vector<32x256xf32>,
    %c0_117 = arith.constant 0 : index
    %c0_118 = arith.constant 0 : index
    %124 = vector.load %arg14[%c0_117, %c0_118] : memref<32x256xf32, #tpu.memory_space<vmem>>, vector<32x256xf32>
    %c16_i32_119 = arith.constant 16 : i32
    %125 = tpu.dynamic_rotate %124 by %c16_i32_119 dim 1 : vector<32x256xf32>, i32 -> vector<32x256xf32>
    %c1_120 = arith.constant 1 : index
    %c0_121 = arith.constant 0 : index
    %126 = vector.load %arg2[%c1_120, %c0_121] : memref<9x256xf32, #tpu.memory_space<vmem>>, vector<1x256xf32>
    %127 = vector.broadcast %126 : vector<1x256xf32> to vector<32x256xf32>
    %128 = arith.mulf %125, %127 : vector<32x256xf32>
    %c32_122 = arith.constant 32 : index
    %c0_123 = arith.constant 0 : index
    %129 = vector.load %arg12[%c32_122, %c0_123] : memref<288x256xf32, #tpu.memory_space<vmem>>, vector<32x256xf32>
    tpu.vector_store %arg12[%c32_122, %c0_123], %128 {strides = array<i32>} : memref<288x256xf32, #tpu.memory_space<vmem>>, vector<32x256xf32>,
    %c0_124 = arith.constant 0 : index
    %c0_125 = arith.constant 0 : index
    %130 = vector.load %arg14[%c0_124, %c0_125] : memref<32x256xf32, #tpu.memory_space<vmem>>, vector<32x256xf32>
    %c15_i32_126 = arith.constant 15 : i32
    %131 = tpu.dynamic_rotate %130 by %c15_i32_126 dim 1 : vector<32x256xf32>, i32 -> vector<32x256xf32>
    %c2_127 = arith.constant 2 : index
    %c0_128 = arith.constant 0 : index
    %132 = vector.load %arg2[%c2_127, %c0_128] : memref<9x256xf32, #tpu.memory_space<vmem>>, vector<1x256xf32>
    %133 = vector.broadcast %132 : vector<1x256xf32> to vector<32x256xf32>
    %134 = arith.mulf %131, %133 : vector<32x256xf32>
    %c64_129 = arith.constant 64 : index
    %c0_130 = arith.constant 0 : index
    %135 = vector.load %arg12[%c64_129, %c0_130] : memref<288x256xf32, #tpu.memory_space<vmem>>, vector<32x256xf32>
    tpu.vector_store %arg12[%c64_129, %c0_130], %134 {strides = array<i32>} : memref<288x256xf32, #tpu.memory_space<vmem>>, vector<32x256xf32>,
    %c0_131 = arith.constant 0 : index
    %c0_132 = arith.constant 0 : index
    %136 = vector.load %arg14[%c0_131, %c0_132] : memref<32x256xf32, #tpu.memory_space<vmem>>, vector<32x256xf32>
    %c1_i32_133 = arith.constant 1 : i32
    %137 = tpu.dynamic_rotate %136 by %c1_i32_133 dim 1 : vector<32x256xf32>, i32 -> vector<32x256xf32>
    %c3_134 = arith.constant 3 : index
    %c0_135 = arith.constant 0 : index
    %138 = vector.load %arg2[%c3_134, %c0_135] : memref<9x256xf32, #tpu.memory_space<vmem>>, vector<1x256xf32>
    %139 = vector.broadcast %138 : vector<1x256xf32> to vector<32x256xf32>
    %140 = arith.mulf %137, %139 : vector<32x256xf32>
    %c96_136 = arith.constant 96 : index
    %c0_137 = arith.constant 0 : index
    %141 = vector.load %arg12[%c96_136, %c0_137] : memref<288x256xf32, #tpu.memory_space<vmem>>, vector<32x256xf32>
    tpu.vector_store %arg12[%c96_136, %c0_137], %140 {strides = array<i32>} : memref<288x256xf32, #tpu.memory_space<vmem>>, vector<32x256xf32>,
    %c0_138 = arith.constant 0 : index
    %c0_139 = arith.constant 0 : index
    %142 = vector.load %arg14[%c0_138, %c0_139] : memref<32x256xf32, #tpu.memory_space<vmem>>, vector<32x256xf32>
    %c128_140 = arith.constant 128 : index
    %c0_141 = arith.constant 0 : index
    %143 = vector.load %arg12[%c128_140, %c0_141] : memref<288x256xf32, #tpu.memory_space<vmem>>, vector<32x256xf32>
    tpu.vector_store %arg12[%c128_140, %c0_141], %142 {strides = array<i32>} : memref<288x256xf32, #tpu.memory_space<vmem>>, vector<32x256xf32>,
    %c0_142 = arith.constant 0 : index
    %c0_143 = arith.constant 0 : index
    %144 = vector.load %arg14[%c0_142, %c0_143] : memref<32x256xf32, #tpu.memory_space<vmem>>, vector<32x256xf32>
    %c255_i32_144 = arith.constant 255 : i32
    %145 = tpu.dynamic_rotate %144 by %c255_i32_144 dim 1 : vector<32x256xf32>, i32 -> vector<32x256xf32>
    %c5_145 = arith.constant 5 : index
    %c0_146 = arith.constant 0 : index
    %146 = vector.load %arg2[%c5_145, %c0_146] : memref<9x256xf32, #tpu.memory_space<vmem>>, vector<1x256xf32>
    %147 = vector.broadcast %146 : vector<1x256xf32> to vector<32x256xf32>
    %148 = arith.mulf %145, %147 : vector<32x256xf32>
    %c160 = arith.constant 160 : index
    %c0_147 = arith.constant 0 : index
    %149 = vector.load %arg12[%c160, %c0_147] : memref<288x256xf32, #tpu.memory_space<vmem>>, vector<32x256xf32>
    tpu.vector_store %arg12[%c160, %c0_147], %148 {strides = array<i32>} : memref<288x256xf32, #tpu.memory_space<vmem>>, vector<32x256xf32>,
    %c0_148 = arith.constant 0 : index
    %c0_149 = arith.constant 0 : index
    %150 = vector.load %arg14[%c0_148, %c0_149] : memref<32x256xf32, #tpu.memory_space<vmem>>, vector<32x256xf32>
    %c241_i32_150 = arith.constant 241 : i32
    %151 = tpu.dynamic_rotate %150 by %c241_i32_150 dim 1 : vector<32x256xf32>, i32 -> vector<32x256xf32>
    %c6_151 = arith.constant 6 : index
    %c0_152 = arith.constant 0 : index
    %152 = vector.load %arg2[%c6_151, %c0_152] : memref<9x256xf32, #tpu.memory_space<vmem>>, vector<1x256xf32>
    %153 = vector.broadcast %152 : vector<1x256xf32> to vector<32x256xf32>
    %154 = arith.mulf %151, %153 : vector<32x256xf32>
    %c192 = arith.constant 192 : index
    %c0_153 = arith.constant 0 : index
    %155 = vector.load %arg12[%c192, %c0_153] : memref<288x256xf32, #tpu.memory_space<vmem>>, vector<32x256xf32>
    tpu.vector_store %arg12[%c192, %c0_153], %154 {strides = array<i32>} : memref<288x256xf32, #tpu.memory_space<vmem>>, vector<32x256xf32>,
    %c0_154 = arith.constant 0 : index
    %c0_155 = arith.constant 0 : index
    %156 = vector.load %arg14[%c0_154, %c0_155] : memref<32x256xf32, #tpu.memory_space<vmem>>, vector<32x256xf32>
    %c240_i32_156 = arith.constant 240 : i32
    %157 = tpu.dynamic_rotate %156 by %c240_i32_156 dim 1 : vector<32x256xf32>, i32 -> vector<32x256xf32>
    %c7_157 = arith.constant 7 : index
    %c0_158 = arith.constant 0 : index
    %158 = vector.load %arg2[%c7_157, %c0_158] : memref<9x256xf32, #tpu.memory_space<vmem>>, vector<1x256xf32>
    %159 = vector.broadcast %158 : vector<1x256xf32> to vector<32x256xf32>
    %160 = arith.mulf %157, %159 : vector<32x256xf32>
    %c224 = arith.constant 224 : index
    %c0_159 = arith.constant 0 : index
    %161 = vector.load %arg12[%c224, %c0_159] : memref<288x256xf32, #tpu.memory_space<vmem>>, vector<32x256xf32>
    tpu.vector_store %arg12[%c224, %c0_159], %160 {strides = array<i32>} : memref<288x256xf32, #tpu.memory_space<vmem>>, vector<32x256xf32>,
    %c0_160 = arith.constant 0 : index
    %c0_161 = arith.constant 0 : index
    %162 = vector.load %arg14[%c0_160, %c0_161] : memref<32x256xf32, #tpu.memory_space<vmem>>, vector<32x256xf32>
    %c239_i32_162 = arith.constant 239 : i32
    %163 = tpu.dynamic_rotate %162 by %c239_i32_162 dim 1 : vector<32x256xf32>, i32 -> vector<32x256xf32>
    %c8_163 = arith.constant 8 : index
    %c0_164 = arith.constant 0 : index
    %164 = vector.load %arg2[%c8_163, %c0_164] : memref<9x256xf32, #tpu.memory_space<vmem>>, vector<1x256xf32>
    %165 = vector.broadcast %164 : vector<1x256xf32> to vector<32x256xf32>
    %166 = arith.mulf %163, %165 : vector<32x256xf32>
    %c256 = arith.constant 256 : index
    %c0_165 = arith.constant 0 : index
    %167 = vector.load %arg12[%c256, %c0_165] : memref<288x256xf32, #tpu.memory_space<vmem>>, vector<32x256xf32>
    tpu.vector_store %arg12[%c256, %c0_165], %166 {strides = array<i32>} : memref<288x256xf32, #tpu.memory_space<vmem>>, vector<32x256xf32>,
    %c0_166 = arith.constant 0 : index
    %c0_167 = arith.constant 0 : index
    %168 = vector.load %arg7[%c0_166, %c0_167] : memref<2x288xf32, #tpu.memory_space<vmem>>, vector<2x288xf32>
    %c0_168 = arith.constant 0 : index
    %c0_169 = arith.constant 0 : index
    %169 = vector.load %arg12[%c0_168, %c0_169] : memref<288x256xf32, #tpu.memory_space<vmem>>, vector<288x256xf32>
    %cst_170 = arith.constant dense<0.000000e+00> : vector<2x256xf32>
    %170 = tpu.matmul %168, %169, %cst_170 {dimension_numbers = #tpu.dot_dimension_numbers<[1], [0], [0], [1], [0, 0, 1, 1], [], []>} : vector<2x288xf32>, vector<288x256xf32>, vector<2x256xf32> -> vector<2x256xf32>
    %c0_171 = arith.constant 0 : index
    %c0_172 = arith.constant 0 : index
    %171 = vector.load %arg8[%c0_171, %c0_172] : memref<2x1xf32, #tpu.memory_space<vmem>>, vector<2x1xf32>
    %172 = vector.broadcast %171 : vector<2x1xf32> to vector<2x256xf32>
    %173 = arith.addf %170, %172 : vector<2x256xf32>
    %c0_173 = arith.constant 0 : index
    %c0_174 = arith.constant 0 : index
    %174 = vector.load %arg9[%c0_173, %c0_174] : memref<2x256xf32, #tpu.memory_space<vmem>>, vector<2x256xf32>
    tpu.vector_store %arg9[%c0_173, %c0_174], %173 {strides = array<i32>} : memref<2x256xf32, #tpu.memory_space<vmem>>, vector<2x256xf32>,
    return
  }
  func.func @transform_0(%arg0: i32) -> (i32, i32) {
    %c0_i32 = arith.constant 0 : i32
    %c0_i32_0 = arith.constant 0 : i32
    return %c0_i32, %arg0 : i32, i32
  }
  func.func @transform_1(%arg0: i32) -> (i32, i32) {
    %c0_i32 = arith.constant 0 : i32
    %c0_i32_0 = arith.constant 0 : i32
    %c0_i32_1 = arith.constant 0 : i32
    return %c0_i32, %c0_i32_0 : i32, i32
  }
  func.func @transform_2(%arg0: i32) -> (i32, i32) {
    %c0_i32 = arith.constant 0 : i32
    %c0_i32_0 = arith.constant 0 : i32
    %c0_i32_1 = arith.constant 0 : i32
    return %c0_i32, %c0_i32_0 : i32, i32
  }
  func.func @transform_3(%arg0: i32) -> (i32, i32) {
    %c0_i32 = arith.constant 0 : i32
    %c0_i32_0 = arith.constant 0 : i32
    %c0_i32_1 = arith.constant 0 : i32
    return %c0_i32, %c0_i32_0 : i32, i32
  }
  func.func @transform_4(%arg0: i32) -> (i32, i32) {
    %c0_i32 = arith.constant 0 : i32
    %c0_i32_0 = arith.constant 0 : i32
    %c0_i32_1 = arith.constant 0 : i32
    return %c0_i32, %c0_i32_0 : i32, i32
  }
  func.func @transform_5(%arg0: i32) -> (i32, i32) {
    %c0_i32 = arith.constant 0 : i32
    %c0_i32_0 = arith.constant 0 : i32
    %c0_i32_1 = arith.constant 0 : i32
    return %c0_i32, %c0_i32_0 : i32, i32
  }
  func.func @transform_6(%arg0: i32) -> (i32, i32) {
    %c0_i32 = arith.constant 0 : i32
    %c0_i32_0 = arith.constant 0 : i32
    %c0_i32_1 = arith.constant 0 : i32
    return %c0_i32, %c0_i32_0 : i32, i32
  }
  func.func @transform_7(%arg0: i32) -> (i32, i32) {
    %c0_i32 = arith.constant 0 : i32
    %c0_i32_0 = arith.constant 0 : i32
    %c0_i32_1 = arith.constant 0 : i32
    return %c0_i32, %c0_i32_0 : i32, i32
  }
  func.func @transform_8(%arg0: i32) -> (i32, i32) {
    %c0_i32 = arith.constant 0 : i32
    %c0_i32_0 = arith.constant 0 : i32
    return %c0_i32, %arg0 : i32, i32
  }
}

</mosaic_0001>

<llo_original>
// kernel: tpu_custom_call.1
$region0: #{tpu_custom_call.1}
  #allocation0 [shape = 'u32[]', space=smem, size = 0x4, offset = 0x4, fixed_abs, tag = 'smem constant byte address 0x4 - core index']
  #allocation1 [shape = 'u32[144,128]{1,0:T(1,128)}', space=vmem, size = 0x12000, scoped, tag = 'internal scratch']
  #allocation2 [shape = 'f32[36,256]{1,0:T(8,128)}', space=vmem, size = 0xa000, scoped, tag = 'scratch operand']
  #allocation3 [shape = 'f32[144,256]{1,0:T(8,128)}', space=vmem, size = 0x24000, scoped, tag = 'scratch operand']
  #allocation4 [shape = 'f32[288,256]{1,0:T(8,128)}', space=vmem, size = 0x48000, scoped, tag = 'scratch operand']
  #allocation5 [shape = 'f32[16,256]{1,0:T(8,128)}', space=vmem, size = 0x4000, scoped, tag = 'scratch operand']
  #allocation6 [shape = 'f32[32,256]{1,0:T(8,128)}', space=vmem, size = 0x8000, scoped, tag = 'scratch operand']
  %s0 = inlined_call_operand.hbm [shape: f32[4,512], index: 0, kind: input, shape index: {}]
  %s1 = inlined_call_operand.hbm [shape: f32[9,256], index: 1, kind: input, shape index: {}]
  %s2 = inlined_call_operand.hbm [shape: f32[16,36], index: 2, kind: input, shape index: {}]
  %s3 = inlined_call_operand.vmem [shape: f32[16,1], index: 3, kind: input, shape index: {}]
  %s4 = inlined_call_operand.vmem [shape: f32[32,144], index: 4, kind: input, shape index: {}]
  %s5 = inlined_call_operand.vmem [shape: f32[32,1], index: 5, kind: input, shape index: {}]
  %s6 = inlined_call_operand.vmem [shape: f32[2,288], index: 6, kind: input, shape index: {}]
  %s7 = inlined_call_operand.vmem [shape: f32[2,1], index: 7, kind: input, shape index: {}]
  %s8 = inlined_call_operand.hbm [shape: f32[2,512], index: 8, kind: output, shape index: {}]
  %s9 = sld [smem:[#allocation0]]
  $region77: #{tpu_custom_call.1} parent=0
    _
  %s11 = ssub.s32 1, %s9
  %s12 = scalar_select 0, %s11, %s9
  $region1: #{tpu_custom_call.1} parent=0
    #allocation7 [shape = 'u8[8192]{0}', space=vmem, size = 0x2000, scoped, tag = 'input window, operand 0']
    #allocation8 [shape = 's32[2]{0}', space=sflag, size = 0x8, scoped, tag = 'scoped memory for tpu_custom_call.1']
    #allocation9 [shape = 's32[2]{0}', space=sflag, size = 0x8, scoped, tag = 'scoped memory for tpu_custom_call.1']
    #allocation10 [shape = 'u8[16384]{0}', space=vmem, size = 0x4000, scoped, tag = 'input window, operand 1, single buffered']
    #allocation11 [shape = 's32[1]{0}', space=sflag, size = 0x4, scoped, tag = 'scoped memory for tpu_custom_call.1']
    #allocation12 [shape = 'u8[8192]{0}', space=vmem, size = 0x2000, scoped, tag = 'input window, operand 2, single buffered']
    #allocation13 [shape = 'u8[4096]{0}', space=vmem, size = 0x1000, scoped, tag = 'output window, operand 0']
    %13 = vsyncpa [#allocation8], 0
    %s14 = scalar_lea.sflag [#allocation8], 1
    %15 = vsyncpa %s14, 0
    %16 = vsyncpa [#allocation11], 0
    %17 = vsyncpa [#allocation9], 0
    %s18 = scalar_lea.sflag [#allocation9], 1
    %19 = vsyncpa %s18, 0
    loop: start=0, step=1, limit=4
    $region2: #{tpu_custom_call.1} parent=1 // loop_pre_header
      _
    $region3: #{tpu_custom_call.1} parent=1 // loop_header
      %s21 = sphi 0, %s25
      %p22 = scmp.ge.s32.totalorder %s21, 4
      %s31 = sphi 0, %s33
      %s34 = sphi 0, %s31
      %s35 = sphi 0, %s34
      %s51 = sphi 0, %s35
      %s55 = sphi 0, %s55
      %s57 = sphi 0, %s55
      %s58 = sphi 0, %s57
      %s72 = sphi 0, %s58
      %s76 = sphi 0, %s76
      %s78 = sphi 0, %s76
      %s79 = sphi 0, %s78
      %s93 = sphi 0, %s79
      %s97 = sphi 0, %s97
      %s99 = sphi 0, %s97
      %s100 = sphi 0, %s99
      %s114 = sphi 0, %s100
      %s118 = sphi 0, %s118
      %s120 = sphi 0, %s118
      %s121 = sphi 0, %s120
      %s135 = sphi 0, %s121
      %s139 = sphi 0, %s139
      %s141 = sphi 0, %s139
      %s142 = sphi 0, %s141
      %s156 = sphi 0, %s142
      %s160 = sphi 0, %s160
      %s162 = sphi 0, %s160
      %s163 = sphi 0, %s162
      %s177 = sphi 0, %s163
      %s181 = sphi 0, %s181
      %s183 = sphi 0, %s181
      %s184 = sphi 0, %s183
      %s198 = sphi 0, %s184
      %s204 = sphi 0, %s206
      %s207 = sphi 0, %s204
      %s208 = sphi 0, %s207
      %s224 = sphi 0, %s208
    $region4: #{tpu_custom_call.1} parent=1 // loop_header_branch
      %24 = sbr.rel (%p22) target = $region8
    $region5: #{tpu_custom_call.1} parent=1 // loop_body
      %s26 = ssub.s32 %s21, 1
      %s27 = ssub.s32 %s21, 2
      %s28 = sadd.s32 %s21, 1
      %s29 = ssub.s32 %s21, %s28
      %p30 = scmp.eq.s32.totalorder %s29, 0
      %s32 = sadd.s32 %s31, 1
      %s33 = scalar_select %p30, %s31, %s32
      %p36 = pneg %p30
      %p37 = scmp.eq.s32.totalorder %s21, 1
      %p38 = por %p36, %p37
      %p39 = scmp.ne.s32.totalorder %s31, %s34
      %p40 = scmp.eq.s32.totalorder %s21, 0
      %p41 = por %p39, %p40
      %p42 = scmp.ne.s32.totalorder %s31, %s34
      %p43 = scmp.eq.s32.totalorder %s26, 1
      %p44 = por %p42, %p43
      %p45 = scmp.ne.s32.totalorder %s34, %s35
      %p46 = scmp.eq.s32.totalorder %s26, 0
      %p47 = por %p45, %p46
      %p48 = scmp.ne.s32.totalorder %s34, %s35
      %p49 = scmp.eq.s32.totalorder %s27, 1
      %p50 = por %p48, %p49
      %p52 = scmp.ne.s32.totalorder %s35, %s51
      %p53 = scmp.eq.s32.totalorder %s27, 0
      %p54 = por %p52, %p53
      %s56 = sadd.s32 %s55, 1
      %p59 = scmp.eq.s32.totalorder %s21, 1
      %p60 = scmp.ne.s32.totalorder %s55, %s57
      %p61 = scmp.eq.s32.totalorder %s21, 0
      %p62 = por %p60, %p61
      %p63 = scmp.ne.s32.totalorder %s55, %s57
      %p64 = scmp.eq.s32.totalorder %s26, 1
      %p65 = por %p63, %p64
      %p66 = scmp.ne.s32.totalorder %s57, %s58
      %p67 = scmp.eq.s32.totalorder %s26, 0
      %p68 = por %p66, %p67
      %p69 = scmp.ne.s32.totalorder %s57, %s58
      %p70 = scmp.eq.s32.totalorder %s27, 1
      %p71 = por %p69, %p70
      %p73 = scmp.ne.s32.totalorder %s58, %s72
      %p74 = scmp.eq.s32.totalorder %s27, 0
      %p75 = por %p73, %p74
      %s77 = sadd.s32 %s76, 1
      %p80 = scmp.eq.s32.totalorder %s21, 1
      %p81 = scmp.ne.s32.totalorder %s76, %s78
      %p82 = scmp.eq.s32.totalorder %s21, 0
      %p83 = por %p81, %p82
      %p84 = scmp.ne.s32.totalorder %s76, %s78
      %p85 = scmp.eq.s32.totalorder %s26, 1
      %p86 = por %p84, %p85
      %p87 = scmp.ne.s32.totalorder %s78, %s79
      %p88 = scmp.eq.s32.totalorder %s26, 0
      %p89 = por %p87, %p88
      %p90 = scmp.ne.s32.totalorder %s78, %s79
      %p91 = scmp.eq.s32.totalorder %s27, 1
      %p92 = por %p90, %p91
      %p94 = scmp.ne.s32.totalorder %s79, %s93
      %p95 = scmp.eq.s32.totalorder %s27, 0
      %p96 = por %p94, %p95
      %s98 = sadd.s32 %s97, 1
      %p101 = scmp.eq.s32.totalorder %s21, 1
      %p102 = scmp.ne.s32.totalorder %s97, %s99
      %p103 = scmp.eq.s32.totalorder %s21, 0
      %p104 = por %p102, %p103
      %p105 = scmp.ne.s32.totalorder %s97, %s99
      %p106 = scmp.eq.s32.totalorder %s26, 1
      %p107 = por %p105, %p106
      %p108 = scmp.ne.s32.totalorder %s99, %s100
      %p109 = scmp.eq.s32.totalorder %s26, 0
      %p110 = por %p108, %p109
      %p111 = scmp.ne.s32.totalorder %s99, %s100
      %p112 = scmp.eq.s32.totalorder %s27, 1
      %p113 = por %p111, %p112
      %p115 = scmp.ne.s32.totalorder %s100, %s114
      %p116 = scmp.eq.s32.totalorder %s27, 0
      %p117 = por %p115, %p116
      %s119 = sadd.s32 %s118, 1
      %p122 = scmp.eq.s32.totalorder %s21, 1
      %p123 = scmp.ne.s32.totalorder %s118, %s120
      %p124 = scmp.eq.s32.totalorder %s21, 0
      %p125 = por %p123, %p124
      %p126 = scmp.ne.s32.totalorder %s118, %s120
      %p127 = scmp.eq.s32.totalorder %s26, 1
      %p128 = por %p126, %p127
      %p129 = scmp.ne.s32.totalorder %s120, %s121
      %p130 = scmp.eq.s32.totalorder %s26, 0
      %p131 = por %p129, %p130
      %p132 = scmp.ne.s32.totalorder %s120, %s121
      %p133 = scmp.eq.s32.totalorder %s27, 1
      %p134 = por %p132, %p133
      %p136 = scmp.ne.s32.totalorder %s121, %s135
      %p137 = scmp.eq.s32.totalorder %s27, 0
      %p138 = por %p136, %p137
      %s140 = sadd.s32 %s139, 1
      %p143 = scmp.eq.s32.totalorder %s21, 1
      %p144 = scmp.ne.s32.totalorder %s139, %s141
      %p145 = scmp.eq.s32.totalorder %s21, 0
      %p146 = por %p144, %p145
      %p147 = scmp.ne.s32.totalorder %s139, %s141
      %p148 = scmp.eq.s32.totalorder %s26, 1
      %p149 = por %p147, %p148
      %p150 = scmp.ne.s32.totalorder %s141, %s142
      %p151 = scmp.eq.s32.totalorder %s26, 0
      %p152 = por %p150, %p151
      %p153 = scmp.ne.s32.totalorder %s141, %s142
      %p154 = scmp.eq.s32.totalorder %s27, 1
      %p155 = por %p153, %p154
      %p157 = scmp.ne.s32.totalorder %s142, %s156
      %p158 = scmp.eq.s32.totalorder %s27, 0
      %p159 = por %p157, %p158
      %s161 = sadd.s32 %s160, 1
      %p164 = scmp.eq.s32.totalorder %s21, 1
      %p165 = scmp.ne.s32.totalorder %s160, %s162
      %p166 = scmp.eq.s32.totalorder %s21, 0
      %p167 = por %p165, %p166
      %p168 = scmp.ne.s32.totalorder %s160, %s162
      %p169 = scmp.eq.s32.totalorder %s26, 1
      %p170 = por %p168, %p169
      %p171 = scmp.ne.s32.totalorder %s162, %s163
      %p172 = scmp.eq.s32.totalorder %s26, 0
      %p173 = por %p171, %p172
      %p174 = scmp.ne.s32.totalorder %s162, %s163
      %p175 = scmp.eq.s32.totalorder %s27, 1
      %p176 = por %p174, %p175
      %p178 = scmp.ne.s32.totalorder %s163, %s177
      %p179 = scmp.eq.s32.totalorder %s27, 0
      %p180 = por %p178, %p179
      %s182 = sadd.s32 %s181, 1
      %p185 = scmp.eq.s32.totalorder %s21, 1
      %p186 = scmp.ne.s32.totalorder %s181, %s183
      %p187 = scmp.eq.s32.totalorder %s21, 0
      %p188 = por %p186, %p187
      %p189 = scmp.ne.s32.totalorder %s181, %s183
      %p190 = scmp.eq.s32.totalorder %s26, 1
      %p191 = por %p189, %p190
      %p192 = scmp.ne.s32.totalorder %s183, %s184
      %p193 = scmp.eq.s32.totalorder %s26, 0
      %p194 = por %p192, %p193
      %p195 = scmp.ne.s32.totalorder %s183, %s184
      %p196 = scmp.eq.s32.totalorder %s27, 1
      %p197 = por %p195, %p196
      %p199 = scmp.ne.s32.totalorder %s184, %s198
      %p200 = scmp.eq.s32.totalorder %s27, 0
      %p201 = por %p199, %p200
      %s202 = ssub.s32 %s21, %s28
      %p203 = scmp.eq.s32.totalorder %s202, 0
      %s205 = sadd.s32 %s204, 1
      %s206 = scalar_select %p203, %s204, %s205
      %p209 = pneg %p203
      %p210 = scmp.eq.s32.totalorder %s21, 1
      %p211 = por %p209, %p210
      %p212 = scmp.ne.s32.totalorder %s204, %s207
      %p213 = scmp.eq.s32.totalorder %s21, 0
      %p214 = por %p212, %p213
      %p215 = scmp.ne.s32.totalorder %s204, %s207
      %p216 = scmp.eq.s32.totalorder %s26, 1
      %p217 = por %p215, %p216
      %p218 = scmp.ne.s32.totalorder %s207, %s208
      %p219 = scmp.eq.s32.totalorder %s26, 0
      %p220 = por %p218, %p219
      %p221 = scmp.ne.s32.totalorder %s207, %s208
      %p222 = scmp.eq.s32.totalorder %s27, 1
      %p223 = por %p221, %p222
      %p225 = scmp.ne.s32.totalorder %s208, %s224
      %p226 = scmp.eq.s32.totalorder %s27, 0
      %p227 = por %p225, %p226
      %p228 = scmp.le.s32.totalorder 1, %s21
      %p229 = scmp.lt.s32.totalorder %s21, 3
      %p230 = pnand %p228, %p229
      %p231 = pneg %p230
      // Predicated region
      $region9: #{tpu_custom_call.1} parent=5 // pred_check
        _
      $region10: #{tpu_custom_call.1} parent=5 // pred_check_branch
        %233 = sbr.rel (%p230) target = $region12
      $region11: #{tpu_custom_call.1} parent=5 // pred_region
        %s234 = ssub.s32 %s21, 1
        // Predicated region
        $region13: #{tpu_custom_call.1} parent=11 // pred_check
          %p235 = pneg %p68
        $region14: #{tpu_custom_call.1} parent=11 // pred_check_branch
          %237 = sbr.rel (%p235) target = $region16
        $region15: #{tpu_custom_call.1} parent=11 // pred_region
          %s239 = ssub.s32 512, 512
          %240 = vsyncadd [#allocation11], %s239
          %s241 = sshll.u32 [#allocation10], 4
          %s242 = int_to_ptr.vmem [resolvable:$true] %s241
          %247 = dma.hbm_to_vmem [thread:$0]  %s1, 512, %s242, [#allocation11], 256, 256, 16
        $region16: #{tpu_custom_call.1} parent=11 // pred_fallthru
          _
        // Predicated region
        $region17: #{tpu_custom_call.1} parent=11 // pred_check
          %p248 = pneg %p89
        $region18: #{tpu_custom_call.1} parent=11 // pred_check_branch
          %250 = sbr.rel (%p248) target = $region20
        $region19: #{tpu_custom_call.1} parent=11 // pred_region
          %s252 = ssub.s32 256, 256
          %253 = vsyncadd [#allocation11], %s252
          %s254 = sshll.u32 [#allocation12], 4
          %s255 = int_to_ptr.vmem [resolvable:$true] %s254
          %260 = dma.hbm_to_vmem [thread:$0]  %s2, 256, %s255, [#allocation11], 128, 128, 8
        $region20: #{tpu_custom_call.1} parent=11 // pred_fallthru
          _
        // Predicated region
        $region21: #{tpu_custom_call.1} parent=11 // pred_check
          %p261 = pneg %p110
        $region22: #{tpu_custom_call.1} parent=11 // pred_check_branch
          %263 = sbr.rel (%p261) target = $region24
        $region23: #{tpu_custom_call.1} parent=11 // pred_region
          _
        $region24: #{tpu_custom_call.1} parent=11 // pred_fallthru
          _
        // Predicated region
        $region25: #{tpu_custom_call.1} parent=11 // pred_check
          %p264 = pneg %p131
        $region26: #{tpu_custom_call.1} parent=11 // pred_check_branch
          %266 = sbr.rel (%p264) target = $region28
        $region27: #{tpu_custom_call.1} parent=11 // pred_region
          _
        $region28: #{tpu_custom_call.1} parent=11 // pred_fallthru
          _
        // Predicated region
        $region29: #{tpu_custom_call.1} parent=11 // pred_check
          %p267 = pneg %p152
        $region30: #{tpu_custom_call.1} parent=11 // pred_check_branch
          %269 = sbr.rel (%p267) target = $region32
        $region31: #{tpu_custom_call.1} parent=11 // pred_region
          _
        $region32: #{tpu_custom_call.1} parent=11 // pred_fallthru
          _
        // Predicated region
        $region33: #{tpu_custom_call.1} parent=11 // pred_check
          %p270 = pneg %p173
        $region34: #{tpu_custom_call.1} parent=11 // pred_check_branch
          %272 = sbr.rel (%p270) target = $region36
        $region35: #{tpu_custom_call.1} parent=11 // pred_region
          _
        $region36: #{tpu_custom_call.1} parent=11 // pred_fallthru
          _
        // Predicated region
        $region37: #{tpu_custom_call.1} parent=11 // pred_check
          %p273 = pneg %p194
        $region38: #{tpu_custom_call.1} parent=11 // pred_check_branch
          %275 = sbr.rel (%p273) target = $region40
        $region39: #{tpu_custom_call.1} parent=11 // pred_region
          _
        $region40: #{tpu_custom_call.1} parent=11 // pred_fallthru
          _
      $region12: #{tpu_custom_call.1} parent=5 // pred_fallthru
        _
      %p276 = scmp.lt.s32.totalorder %s21, 2
      // Predicated region
      $region41: #{tpu_custom_call.1} parent=5 // pred_check
        %p277 = pneg %p276
      $region42: #{tpu_custom_call.1} parent=5 // pred_check_branch
        %279 = sbr.rel (%p277) target = $region44
      $region43: #{tpu_custom_call.1} parent=5 // pred_region
        // Predicated region
        $region45: #{tpu_custom_call.1} parent=43 // pred_check
          %p280 = pneg %p41
        $region46: #{tpu_custom_call.1} parent=43 // pred_check_branch
          %282 = sbr.rel (%p280) target = $region48
        $region47: #{tpu_custom_call.1} parent=43 // pred_region
          %s283 = sand.u32 %s31, 1
          %s284 = scalar_lea.sflag [#allocation8], %s283
          %s285 = sand.u32 %s31, 1
          %s286 = smul.addr %s285, 8
          %s287 = scalar_lea.vmem [#allocation7], %s286
          %s288 = smul.u32 2, %s21
          %s290 = ssub.s32 128, 128
          %291 = vsyncadd %s284, %s290
          %s292 = smul.addr %s288, 64
          %s293 = scalar_lea.hbm %s0, %s292
          %s295 = sshll.u32 %s287, 4
          %s296 = int_to_ptr.vmem [resolvable:$true] %s295
          %298 = dma.hbm_to_vmem [thread:$0]  %s293, 128, %s296, %s284
        $region48: #{tpu_custom_call.1} parent=43 // pred_fallthru
          _
      $region44: #{tpu_custom_call.1} parent=5 // pred_fallthru
        _
      %p299 = scmp.le.s32.totalorder 1, %s21
      %p300 = scmp.lt.s32.totalorder %s21, 3
      %p301 = pnand %p299, %p300
      %p302 = pneg %p301
      // Predicated region
      $region49: #{tpu_custom_call.1} parent=5 // pred_check
        _
      $region50: #{tpu_custom_call.1} parent=5 // pred_check_branch
        %304 = sbr.rel (%p301) target = $region52
      $region51: #{tpu_custom_call.1} parent=5 // pred_region
        %s305 = ssub.s32 %s21, 1
        %s306 = sand.u32 %s34, 1
        %s307 = scalar_lea.sflag [#allocation8], %s306
        %s308 = sand.u32 %s34, 1
        %s309 = smul.addr %s308, 8
        %s310 = scalar_lea.vmem [#allocation7], %s309
        // Predicated region
        $region53: #{tpu_custom_call.1} parent=51 // pred_check
          %p311 = pneg %p47
        $region54: #{tpu_custom_call.1} parent=51 // pred_check_branch
          %313 = sbr.rel (%p311) target = $region56
        $region55: #{tpu_custom_call.1} parent=51 // pred_region
          %314 = dma.done %s307, 128
        $region56: #{tpu_custom_call.1} parent=51 // pred_fallthru
          _
        // Predicated region
        $region57: #{tpu_custom_call.1} parent=51 // pred_check
          %p315 = pneg %p68
        $region58: #{tpu_custom_call.1} parent=51 // pred_check_branch
          %317 = sbr.rel (%p315) target = $region60
        $region59: #{tpu_custom_call.1} parent=51 // pred_region
          %318 = dma.done [#allocation11], 512
        $region60: #{tpu_custom_call.1} parent=51 // pred_fallthru
          _
        // Predicated region
        $region61: #{tpu_custom_call.1} parent=51 // pred_check
          %p319 = pneg %p89
        $region62: #{tpu_custom_call.1} parent=51 // pred_check_branch
          %321 = sbr.rel (%p319) target = $region64
        $region63: #{tpu_custom_call.1} parent=51 // pred_region
          %322 = dma.done [#allocation11], 256
        $region64: #{tpu_custom_call.1} parent=51 // pred_fallthru
          _
        %s323 = sand.u32 %s34, 1
        %s324 = scalar_lea.sflag [#allocation8], %s323
        %s325 = sand.u32 %s34, 1
        %s326 = smul.addr %s325, 8
        %s327 = scalar_lea.vmem [#allocation7], %s326
        %p328 = pneg %p47
        %p329 = pneg %p44
        %p330 = pneg %p68
        %p331 = pneg %p65
        %p332 = pneg %p89
        %p333 = pneg %p86
        %p334 = pneg %p110
        %p335 = pneg %p107
        %p336 = pneg %p131
        %p337 = pneg %p128
        %p338 = pneg %p152
        %p339 = pneg %p149
        %p340 = pneg %p173
        %p341 = pneg %p170
        %p342 = pneg %p194
        %p343 = pneg %p191
        %p344 = pneg %p220
        %p345 = pneg %p217
        %s346 = sand.u32 %s207, 1
        %s347 = scalar_lea.sflag [#allocation9], %s346
        %s348 = sand.u32 %s207, 1
        %s349 = smul.addr %s348, 4
        %s350 = scalar_lea.vmem [#allocation13], %s349
        %s351 = smul.u32 2, %s26
        %s352 = smul.u32 2, %s26
        %v353 = vld [vmem:[%s310] sm:$0xff]
        %v355 = vcombine.high %v353, %v353
        %357 = vrot.lane.b32.xlu0 %v353, 17
        %v358 = vpop.permute.xlu0 %357
        %359 = vrot.lane.b32.xlu0 %v355, 17
        %v360 = vpop.permute.xlu0 %359
        %v361 = vlaneseq
        %v362 = vand.u32 %v361, 127
        %vm363 = vcmp.lt.s32.totalorder %v362, 17
        %v364 = vsel %vm363, %v358, %v360
        %v365 = vsel %vm363, %v360, %v358
        %v366 = vld [vmem:[#allocation10] ss:$8 sm:$0x3]
        %v368 = vlaneseq
        %v369 = vshrl.u32 %v368, 7
        %v370 = vsub.s32 0, %v369
        %v371 = vrot.slane %v366, %v370
        %v372 = vlaneseq
        %v373 = vshrl.u32 %v372, 7
        %v374 = vsub.s32 1, %v373
        %v375 = vrot.slane %v366, %v374
        %v378 = vmul.f32 %v365, %v371
        %v379 = vmul.f32 %v364, %v375
        %380 = vst [vmem:[#allocation2] sm:$0xf] %v378
        %381 = vst [vmem:[#allocation2 + $0x8] sm:$0xf] %v379
        %v382 = vld [vmem:[%s310] sm:$0xff]
        %v384 = vcombine.high %v382, %v382
        %386 = vrot.lane.b32.xlu0 %v382, 16
        %v387 = vpop.permute.xlu0 %386
        %388 = vrot.lane.b32.xlu0 %v384, 16
        %v389 = vpop.permute.xlu0 %388
        %vm390 = vcmp.lt.s32.totalorder %v362, 16
        %v391 = vsel %vm390, %v387, %v389
        %v392 = vsel %vm390, %v389, %v387
        %s393 = scalar_lea.vmem [#allocation10], 1
        %v394 = vld [vmem:[%s393] ss:$8 sm:$0x3]
        %v396 = vlaneseq
        %v397 = vshrl.u32 %v396, 7
        %v398 = vsub.s32 0, %v397
        %v399 = vrot.slane %v394, %v398
        %v400 = vlaneseq
        %v401 = vshrl.u32 %v400, 7
        %v402 = vsub.s32 1, %v401
        %v403 = vrot.slane %v394, %v402
        %v406 = vmul.f32 %v392, %v399
        %v407 = vmul.f32 %v391, %v403
        %v410 = vrot.slane %v406, 4
        %v411 = vrot.slane %v407, 4
        %414 = vst [vmem:[#allocation2] sm:$0xf0] %v410
        %415 = vst [vmem:[#allocation2 + $0x8] sm:$0xf0] %v411
        %v416 = vld [vmem:[%s310] sm:$0xff]
        %v418 = vcombine.high %v416, %v416
        %420 = vrot.lane.b32.xlu0 %v416, 15
        %v421 = vpop.permute.xlu0 %420
        %422 = vrot.lane.b32.xlu0 %v418, 15
        %v423 = vpop.permute.xlu0 %422
        %vm424 = vcmp.lt.s32.totalorder %v362, 15
        %v425 = vsel %vm424, %v421, %v423
        %v426 = vsel %vm424, %v423, %v421
        %s427 = scalar_lea.vmem [#allocation10], 2
        %v428 = vld [vmem:[%s427] ss:$8 sm:$0x3]
        %v430 = vlaneseq
        %v431 = vshrl.u32 %v430, 7
        %v432 = vsub.s32 0, %v431
        %v433 = vrot.slane %v428, %v432
        %v434 = vlaneseq
        %v435 = vshrl.u32 %v434, 7
        %v436 = vsub.s32 1, %v435
        %v437 = vrot.slane %v428, %v436
        %v440 = vmul.f32 %v426, %v433
        %v441 = vmul.f32 %v425, %v437
        %442 = vst [vmem:[#allocation2 + $0x10] sm:$0xf] %v440
        %443 = vst [vmem:[#allocation2 + $0x18] sm:$0xf] %v441
        %v444 = vld [vmem:[%s310] sm:$0xff]
        %v446 = vcombine.high %v444, %v444
        %448 = vrot.lane.b32.xlu0 %v444, 1
        %v449 = vpop.permute.xlu0 %448
        %450 = vrot.lane.b32.xlu0 %v446, 1
        %v451 = vpop.permute.xlu0 %450
        %vm452 = vcmp.lt.s32.totalorder %v362, 1
        %v453 = vsel %vm452, %v449, %v451
        %v454 = vsel %vm452, %v451, %v449
        %s455 = scalar_lea.vmem [#allocation10], 3
        %v456 = vld [vmem:[%s455] ss:$8 sm:$0x3]
        %v458 = vlaneseq
        %v459 = vshrl.u32 %v458, 7
        %v460 = vsub.s32 0, %v459
        %v461 = vrot.slane %v456, %v460
        %v462 = vlaneseq
        %v463 = vshrl.u32 %v462, 7
        %v464 = vsub.s32 1, %v463
        %v465 = vrot.slane %v456, %v464
        %v468 = vmul.f32 %v454, %v461
        %v469 = vmul.f32 %v453, %v465
        %v472 = vrot.slane %v468, 4
        %v473 = vrot.slane %v469, 4
        %476 = vst [vmem:[#allocation2 + $0x10] sm:$0xf0] %v472
        %477 = vst [vmem:[#allocation2 + $0x18] sm:$0xf0] %v473
        %v478 = vld [vmem:[%s310] sm:$0xff]
        %v480 = vcombine.high %v478, %v478
        %482 = vst [vmem:[#allocation2 + $0x20] sm:$0xf] %v478
        %483 = vst [vmem:[#allocation2 + $0x28] sm:$0xf] %v480
        %v484 = vld [vmem:[%s310] sm:$0xff]
        %v486 = vcombine.high %v484, %v484
        %488 = vrot.lane.b32.xlu0 %v484, 127
        %v489 = vpop.permute.xlu0 %488
        %490 = vrot.lane.b32.xlu0 %v486, 127
        %v491 = vpop.permute.xlu0 %490
        %vm492 = vcmp.lt.s32.totalorder %v362, 127
        %v493 = vsel %vm492, %v489, %v491
        %v494 = vsel %vm492, %v491, %v489
        %s495 = scalar_lea.vmem [#allocation10], 5
        %v496 = vld [vmem:[%s495] ss:$8 sm:$0x3]
        %v498 = vlaneseq
        %v499 = vshrl.u32 %v498, 7
        %v500 = vsub.s32 0, %v499
        %v501 = vrot.slane %v496, %v500
        %v502 = vlaneseq
        %v503 = vshrl.u32 %v502, 7
        %v504 = vsub.s32 1, %v503
        %v505 = vrot.slane %v496, %v504
        %v508 = vmul.f32 %v493, %v501
        %v509 = vmul.f32 %v494, %v505
        %v512 = vrot.slane %v508, 4
        %v513 = vrot.slane %v509, 4
        %516 = vst [vmem:[#allocation2 + $0x20] sm:$0xf0] %v512
        %517 = vst [vmem:[#allocation2 + $0x28] sm:$0xf0] %v513
        %v518 = vld [vmem:[%s310] sm:$0xff]
        %v520 = vcombine.high %v518, %v518
        %522 = vrot.lane.b32.xlu0 %v518, 113
        %v523 = vpop.permute.xlu0 %522
        %524 = vrot.lane.b32.xlu0 %v520, 113
        %v525 = vpop.permute.xlu0 %524
        %vm526 = vcmp.lt.s32.totalorder %v362, 113
        %v527 = vsel %vm526, %v523, %v525
        %v528 = vsel %vm526, %v525, %v523
        %s529 = scalar_lea.vmem [#allocation10], 6
        %v530 = vld [vmem:[%s529] ss:$8 sm:$0x3]
        %v532 = vlaneseq
        %v533 = vshrl.u32 %v532, 7
        %v534 = vsub.s32 0, %v533
        %v535 = vrot.slane %v530, %v534
        %v536 = vlaneseq
        %v537 = vshrl.u32 %v536, 7
        %v538 = vsub.s32 1, %v537
        %v539 = vrot.slane %v530, %v538
        %v542 = vmul.f32 %v527, %v535
        %v543 = vmul.f32 %v528, %v539
        %544 = vst [vmem:[#allocation2 + $0x30] sm:$0xf] %v542
        %545 = vst [vmem:[#allocation2 + $0x38] sm:$0xf] %v543
        %v546 = vld [vmem:[%s310] sm:$0xff]
        %v548 = vcombine.high %v546, %v546
        %550 = vrot.lane.b32.xlu0 %v546, 112
        %v551 = vpop.permute.xlu0 %550
        %552 = vrot.lane.b32.xlu0 %v548, 112
        %v553 = vpop.permute.xlu0 %552
        %vm554 = vcmp.lt.s32.totalorder %v362, 112
        %v555 = vsel %vm554, %v551, %v553
        %v556 = vsel %vm554, %v553, %v551
        %s557 = scalar_lea.vmem [#allocation10], 7
        %v558 = vld [vmem:[%s557] ss:$8 sm:$0x3]
        %v560 = vlaneseq
        %v561 = vshrl.u32 %v560, 7
        %v562 = vsub.s32 0, %v561
        %v563 = vrot.slane %v558, %v562
        %v564 = vlaneseq
        %v565 = vshrl.u32 %v564, 7
        %v566 = vsub.s32 1, %v565
        %v567 = vrot.slane %v558, %v566
        %v570 = vmul.f32 %v555, %v563
        %v571 = vmul.f32 %v556, %v567
        %v574 = vrot.slane %v570, 4
        %v575 = vrot.slane %v571, 4
        %578 = vst [vmem:[#allocation2 + $0x30] sm:$0xf0] %v574
        %579 = vst [vmem:[#allocation2 + $0x38] sm:$0xf0] %v575
        %v580 = vld [vmem:[%s310] sm:$0xff]
        %v582 = vcombine.high %v580, %v580
        %584 = vrot.lane.b32.xlu0 %v580, 111
        %v585 = vpop.permute.xlu0 %584
        %586 = vrot.lane.b32.xlu0 %v582, 111
        %v587 = vpop.permute.xlu0 %586
        %vm588 = vcmp.lt.s32.totalorder %v362, 111
        %v589 = vsel %vm588, %v585, %v587
        %v590 = vsel %vm588, %v587, %v585
        %s591 = scalar_lea.vmem [#allocation10], 16
        %v592 = vld [vmem:[%s591] ss:$8 sm:$0x3]
        %v594 = vlaneseq
        %v595 = vshrl.u32 %v594, 7
        %v596 = vsub.s32 0, %v595
        %v597 = vrot.slane %v592, %v596
        %v598 = vlaneseq
        %v599 = vshrl.u32 %v598, 7
        %v600 = vsub.s32 1, %v599
        %v601 = vrot.slane %v592, %v600
        %v604 = vmul.f32 %v589, %v597
        %v605 = vmul.f32 %v590, %v601
        %606 = vst [vmem:[#allocation2 + $0x40] sm:$0xf] %v604
        %607 = vst [vmem:[#allocation2 + $0x48] sm:$0xf] %v605
        %v608 = vld [vmem:[#allocation12] sm:$0xff]
        %v609 = vld [vmem:[#allocation12 + $0x8] sm:$0xff]
        %v610 = vld [vmem:[#allocation2] sm:$0xff]
        %v611 = vld [vmem:[#allocation2 + $0x8] sm:$0xff]
        %v612 = vld [vmem:[#allocation2 + $0x10] sm:$0xff]
        %v613 = vld [vmem:[#allocation2 + $0x18] sm:$0xff]
        %v614 = vld [vmem:[#allocation2 + $0x20] sm:$0xff]
        %v615 = vld [vmem:[#allocation2 + $0x28] sm:$0xff]
        %v616 = vld [vmem:[#allocation2 + $0x30] sm:$0xff]
        %v617 = vld [vmem:[#allocation2 + $0x38] sm:$0xff]
        %v618 = vld [vmem:[#allocation2 + $0x40] sm:$0xf]
        %v619 = vld [vmem:[#allocation2 + $0x48] sm:$0xf]
        %v620 = vld [vmem:[%s3] sm:$0xff]
        %v621 = vld [vmem:[%s3 + $0x8] sm:$0xff]
        %623 = vset.pattern.permute.xlu0 0
        %624 = vperm.xlu0 %623, %v620
        %v625 = vpop.permute.xlu0 %624
        %628 = vset.pattern.permute.xlu0 0
        %629 = vperm.xlu0 %628, %v621
        %v630 = vpop.permute.xlu0 %629
        %vm632 = vcmask 293888
        %v634 = vsel %vm632, %v608, 0
        %v637 = vsel %vm632, %v609, 0
        %vm639 = vcmask 1043456
        %v641 = vsel %vm639, %v618, 0
        %v644 = vsel %vm639, %v619, 0
        %646 = vmatprep.subr.mxu0 %v611
        %647 = vmatpush1.msra.mxu0 %v610
        %648 = vmatprep.subr.mxu0 %v613
        %649 = vmatpush1.msra.mxu0 %v612
        %650 = vmatprep.subr.mxu0 %v615
        %651 = vmatpush1.msra.mxu0 %v614
        %652 = vmatprep.subr.mxu0 %v617
        %653 = vmatpush1.msra.mxu0 %v616
        %654 = vmatprep.subr.mxu0 %v644
        %655 = vmatpush1.msra.mxu0 %v641
        %656 = vmatprep.subr.mxu0 0.0
        %657 = vmatpush1.msra.mxu0 0.0
        %658 = vmatprep.subr.mxu0 0.0
        %659 = vmatpush1.msra.mxu0 0.0
        %660 = vmatprep.subr.mxu0 0.0
        %661 = vmatpush1.msra.mxu0 0.0
        %662 = vmatprep.subr.mxu0 0.0
        %663 = vmatpush1.msra.mxu0 0.0
        %664 = vmatprep.subr.mxu0 0.0
        %665 = vmatpush1.msra.mxu0 0.0
        %666 = vmatprep.subr.mxu0 0.0
        %667 = vmatpush1.msra.mxu0 0.0
        %668 = vmatprep.subr.mxu0 0.0
        %669 = vmatpush1.msra.mxu0 0.0
        %670 = vmatprep.subr.mxu0 0.0
        %671 = vmatpush1.msra.mxu0 0.0
        %672 = vmatprep.subr.mxu0 0.0
        %673 = vmatpush1.msra.mxu0 0.0
        %674 = vmatprep.subr.mxu0 0.0
        %675 = vmatpush1.msra.mxu0 0.0
        %676 = vmatprep.subr.mxu0 0.0
        %677 = vmatpush1.msra.mxu0 0.0
        %678 = vmatprep.subr.mxu0 0.0
        %679 = vmatpush1.msra.mxu0 0.0
        %680 = vmatprep.subr.mxu0 0.0
        %681 = vmatpush1.msra.mxu0 0.0
        %682 = vmatprep.subr.mxu0 0.0
        %683 = vmatpush1.msra.mxu0 0.0
        %684 = vmatprep.subr.mxu0 0.0
        %685 = vmatpush1.msra.mxu0 0.0
        %686 = vmatprep.subr.mxu0 0.0
        %687 = vmatpush1.msra.mxu0 0.0
        %688 = vmatprep.subr.mxu0 0.0
        %689 = vmatpush1.msra.mxu0 0.0
        %690 = vmatprep.subr.mxu0 0.0
        %691 = vmatpush1.msra.mxu0 0.0
        %692 = vmatprep.subr.mxu0 0.0
        %693 = vmatpush1.msra.mxu0 0.0
        %694 = vmatprep.subr.mxu0 0.0
        %695 = vmatpush1.msra.mxu0 0.0
        %696 = vmatprep.subr.mxu0 0.0
        %697 = vmatpush1.msra.mxu0 0.0
        %698 = vmatprep.subr.mxu0 0.0
        %699 = vmatpush1.msra.mxu0 0.0
        %700 = vmatprep.subr.mxu0 0.0
        %701 = vmatpush1.msra.mxu0 0.0
        %702 = vmatprep.subr.mxu0 0.0
        %703 = vmatpush1.msra.mxu0 0.0
        %704 = vmatprep.subr.mxu0 0.0
        %705 = vmatpush1.msra.mxu0 0.0
        %706 = vmatprep.subr.mxu0 0.0
        %707 = vmatpush1.msra.mxu0 0.0
        %708 = vmatprep.subr.mxu0 0.0
        %709 = vmatpush1.msra.mxu0 0.0
        %710 = vmatprep.mubr.f32.mxu0 0.0
        %711 = vmatmul.mubr.f32.gmra.mrb[0].mxu0 %v634
        %v712 = vpop.f32.mrb[0].mxu0
        %v713 = vadd.f32 %v625, %v712
        %v714 = vpop.f32.mrb[0].mxu0
        %v715 = vadd.f32 %v625, %v714
        %716 = vmatprep.mubr.f32.mxu0 0.0
        %717 = vmatmul.mubr.f32.gmra.mrb[0].mxu0 %v637
        %v718 = vpop.f32.mrb[0].mxu0
        %v719 = vadd.f32 %v630, %v718
        %v720 = vpop.f32.mrb[0].mxu0
        %v721 = vadd.f32 %v630, %v720
        %722 = vdwg.mxu0
        %v723 = vmax.f32 %v713, 0.0
        %v724 = vmax.f32 %v715, 0.0
        %v725 = vmax.f32 %v719, 0.0
        %v726 = vmax.f32 %v721, 0.0
        %727 = vst [vmem:[#allocation5] sm:$0xff] %v723
        %728 = vst [vmem:[#allocation5 + $0x8] sm:$0xff] %v724
        %729 = vst [vmem:[#allocation5 + $0x10] sm:$0xff] %v725
        %730 = vst [vmem:[#allocation5 + $0x18] sm:$0xff] %v726
        %v731 = vld [vmem:[#allocation5] sm:$0xff]
        %v732 = vld [vmem:[#allocation5 + $0x8] sm:$0xff]
        %v733 = vld [vmem:[#allocation5 + $0x10] sm:$0xff]
        %v734 = vld [vmem:[#allocation5 + $0x18] sm:$0xff]
        %735 = vrot.lane.b32.xlu0 %v731, 17
        %v736 = vpop.permute.xlu0 %735
        %737 = vrot.lane.b32.xlu0 %v733, 17
        %v738 = vpop.permute.xlu0 %737
        %739 = vrot.lane.b32.xlu0 %v732, 17
        %v740 = vpop.permute.xlu0 %739
        %741 = vrot.lane.b32.xlu0 %v734, 17
        %v742 = vpop.permute.xlu0 %741
        %v743 = vsel %vm363, %v736, %v740
        %v744 = vsel %vm363, %v738, %v742
        %v745 = vsel %vm363, %v740, %v736
        %v746 = vsel %vm363, %v742, %v738
        %v747 = vld [vmem:[#allocation10] ss:$8 sm:$0x3]
        %v749 = vlaneseq
        %v750 = vshrl.u32 %v749, 7
        %v751 = vsub.s32 0, %v750
        %v752 = vrot.slane %v747, %v751
        %v753 = vlaneseq
        %v754 = vshrl.u32 %v753, 7
        %v755 = vsub.s32 1, %v754
        %v756 = vrot.slane %v747, %v755
        %v759 = vmul.f32 %v745, %v752
        %v760 = vmul.f32 %v743, %v756
        %v761 = vmul.f32 %v746, %v752
        %v762 = vmul.f32 %v744, %v756
        %763 = vst [vmem:[#allocation3] sm:$0xff] %v759
        %764 = vst [vmem:[#allocation3 + $0x8] sm:$0xff] %v760
        %765 = vst [vmem:[#allocation3 + $0x10] sm:$0xff] %v761
        %766 = vst [vmem:[#allocation3 + $0x18] sm:$0xff] %v762
        %v767 = vld [vmem:[#allocation5] sm:$0xff]
        %v768 = vld [vmem:[#allocation5 + $0x8] sm:$0xff]
        %v769 = vld [vmem:[#allocation5 + $0x10] sm:$0xff]
        %v770 = vld [vmem:[#allocation5 + $0x18] sm:$0xff]
        %771 = vrot.lane.b32.xlu0 %v767, 16
        %v772 = vpop.permute.xlu0 %771
        %773 = vrot.lane.b32.xlu0 %v769, 16
        %v774 = vpop.permute.xlu0 %773
        %775 = vrot.lane.b32.xlu0 %v768, 16
        %v776 = vpop.permute.xlu0 %775
        %777 = vrot.lane.b32.xlu0 %v770, 16
        %v778 = vpop.permute.xlu0 %777
        %v779 = vsel %vm390, %v772, %v776
        %v780 = vsel %vm390, %v774, %v778
        %v781 = vsel %vm390, %v776, %v772
        %v782 = vsel %vm390, %v778, %v774
        %v783 = vld [vmem:[%s393] ss:$8 sm:$0x3]
        %v785 = vlaneseq
        %v786 = vshrl.u32 %v785, 7
        %v787 = vsub.s32 0, %v786
        %v788 = vrot.slane %v783, %v787
        %v789 = vlaneseq
        %v790 = vshrl.u32 %v789, 7
        %v791 = vsub.s32 1, %v790
        %v792 = vrot.slane %v783, %v791
        %v795 = vmul.f32 %v781, %v788
        %v796 = vmul.f32 %v779, %v792
        %v797 = vmul.f32 %v782, %v788
        %v798 = vmul.f32 %v780, %v792
        %799 = vst [vmem:[#allocation3 + $0x20] sm:$0xff] %v795
        %800 = vst [vmem:[#allocation3 + $0x28] sm:$0xff] %v796
        %801 = vst [vmem:[#allocation3 + $0x30] sm:$0xff] %v797
        %802 = vst [vmem:[#allocation3 + $0x38] sm:$0xff] %v798
        %v803 = vld [vmem:[#allocation5] sm:$0xff]
        %v804 = vld [vmem:[#allocation5 + $0x8] sm:$0xff]
        %v805 = vld [vmem:[#allocation5 + $0x10] sm:$0xff]
        %v806 = vld [vmem:[#allocation5 + $0x18] sm:$0xff]
        %807 = vrot.lane.b32.xlu0 %v803, 15
        %v808 = vpop.permute.xlu0 %807
        %809 = vrot.lane.b32.xlu0 %v805, 15
        %v810 = vpop.permute.xlu0 %809
        %811 = vrot.lane.b32.xlu0 %v804, 15
        %v812 = vpop.permute.xlu0 %811
        %813 = vrot.lane.b32.xlu0 %v806, 15
        %v814 = vpop.permute.xlu0 %813
        %v815 = vsel %vm424, %v808, %v812
        %v816 = vsel %vm424, %v810, %v814
        %v817 = vsel %vm424, %v812, %v808
        %v818 = vsel %vm424, %v814, %v810
        %v819 = vld [vmem:[%s427] ss:$8 sm:$0x3]
        %v821 = vlaneseq
        %v822 = vshrl.u32 %v821, 7
        %v823 = vsub.s32 0, %v822
        %v824 = vrot.slane %v819, %v823
        %v825 = vlaneseq
        %v826 = vshrl.u32 %v825, 7
        %v827 = vsub.s32 1, %v826
        %v828 = vrot.slane %v819, %v827
        %v831 = vmul.f32 %v817, %v824
        %v832 = vmul.f32 %v815, %v828
        %v833 = vmul.f32 %v818, %v824
        %v834 = vmul.f32 %v816, %v828
        %835 = vst [vmem:[#allocation3 + $0x40] sm:$0xff] %v831
        %836 = vst [vmem:[#allocation3 + $0x48] sm:$0xff] %v832
        %837 = vst [vmem:[#allocation3 + $0x50] sm:$0xff] %v833
        %838 = vst [vmem:[#allocation3 + $0x58] sm:$0xff] %v834
        %v839 = vld [vmem:[#allocation5] sm:$0xff]
        %v840 = vld [vmem:[#allocation5 + $0x8] sm:$0xff]
        %v841 = vld [vmem:[#allocation5 + $0x10] sm:$0xff]
        %v842 = vld [vmem:[#allocation5 + $0x18] sm:$0xff]
        %843 = vrot.lane.b32.xlu0 %v839, 1
        %v844 = vpop.permute.xlu0 %843
        %845 = vrot.lane.b32.xlu0 %v841, 1
        %v846 = vpop.permute.xlu0 %845
        %847 = vrot.lane.b32.xlu0 %v840, 1
        %v848 = vpop.permute.xlu0 %847
        %849 = vrot.lane.b32.xlu0 %v842, 1
        %v850 = vpop.permute.xlu0 %849
        %v851 = vsel %vm452, %v844, %v848
        %v852 = vsel %vm452, %v846, %v850
        %v853 = vsel %vm452, %v848, %v844
        %v854 = vsel %vm452, %v850, %v846
        %v855 = vld [vmem:[%s455] ss:$8 sm:$0x3]
        %v857 = vlaneseq
        %v858 = vshrl.u32 %v857, 7
        %v859 = vsub.s32 0, %v858
        %v860 = vrot.slane %v855, %v859
        %v861 = vlaneseq
        %v862 = vshrl.u32 %v861, 7
        %v863 = vsub.s32 1, %v862
        %v864 = vrot.slane %v855, %v863
        %v867 = vmul.f32 %v853, %v860
        %v868 = vmul.f32 %v851, %v864
        %v869 = vmul.f32 %v854, %v860
        %v870 = vmul.f32 %v852, %v864
        %871 = vst [vmem:[#allocation3 + $0x60] sm:$0xff] %v867
        %872 = vst [vmem:[#allocation3 + $0x68] sm:$0xff] %v868
        %873 = vst [vmem:[#allocation3 + $0x70] sm:$0xff] %v869
        %874 = vst [vmem:[#allocation3 + $0x78] sm:$0xff] %v870
        %v875 = vld [vmem:[#allocation5] sm:$0xff]
        %v876 = vld [vmem:[#allocation5 + $0x8] sm:$0xff]
        %v877 = vld [vmem:[#allocation5 + $0x10] sm:$0xff]
        %v878 = vld [vmem:[#allocation5 + $0x18] sm:$0xff]
        %879 = vst [vmem:[#allocation3 + $0x80] sm:$0xff] %v875
        %880 = vst [vmem:[#allocation3 + $0x88] sm:$0xff] %v876
        %881 = vst [vmem:[#allocation3 + $0x90] sm:$0xff] %v877
        %882 = vst [vmem:[#allocation3 + $0x98] sm:$0xff] %v878
        %v883 = vld [vmem:[#allocation5] sm:$0xff]
        %v884 = vld [vmem:[#allocation5 + $0x8] sm:$0xff]
        %v885 = vld [vmem:[#allocation5 + $0x10] sm:$0xff]
        %v886 = vld [vmem:[#allocation5 + $0x18] sm:$0xff]
        %887 = vrot.lane.b32.xlu0 %v883, 127
        %v888 = vpop.permute.xlu0 %887
        %889 = vrot.lane.b32.xlu0 %v885, 127
        %v890 = vpop.permute.xlu0 %889
        %891 = vrot.lane.b32.xlu0 %v884, 127
        %v892 = vpop.permute.xlu0 %891
        %893 = vrot.lane.b32.xlu0 %v886, 127
        %v894 = vpop.permute.xlu0 %893
        %v895 = vsel %vm492, %v888, %v892
        %v896 = vsel %vm492, %v890, %v894
        %v897 = vsel %vm492, %v892, %v888
        %v898 = vsel %vm492, %v894, %v890
        %v899 = vld [vmem:[%s495] ss:$8 sm:$0x3]
        %v901 = vlaneseq
        %v902 = vshrl.u32 %v901, 7
        %v903 = vsub.s32 0, %v902
        %v904 = vrot.slane %v899, %v903
        %v905 = vlaneseq
        %v906 = vshrl.u32 %v905, 7
        %v907 = vsub.s32 1, %v906
        %v908 = vrot.slane %v899, %v907
        %v911 = vmul.f32 %v895, %v904
        %v912 = vmul.f32 %v897, %v908
        %v913 = vmul.f32 %v896, %v904
        %v914 = vmul.f32 %v898, %v908
        %915 = vst [vmem:[#allocation3 + $0xa0] sm:$0xff] %v911
        %916 = vst [vmem:[#allocation3 + $0xa8] sm:$0xff] %v912
        %917 = vst [vmem:[#allocation3 + $0xb0] sm:$0xff] %v913
        %918 = vst [vmem:[#allocation3 + $0xb8] sm:$0xff] %v914
        %v919 = vld [vmem:[#allocation5] sm:$0xff]
        %v920 = vld [vmem:[#allocation5 + $0x8] sm:$0xff]
        %v921 = vld [vmem:[#allocation5 + $0x10] sm:$0xff]
        %v922 = vld [vmem:[#allocation5 + $0x18] sm:$0xff]
        %923 = vrot.lane.b32.xlu0 %v919, 113
        %v924 = vpop.permute.xlu0 %923
        %925 = vrot.lane.b32.xlu0 %v921, 113
        %v926 = vpop.permute.xlu0 %925
        %927 = vrot.lane.b32.xlu0 %v920, 113
        %v928 = vpop.permute.xlu0 %927
        %929 = vrot.lane.b32.xlu0 %v922, 113
        %v930 = vpop.permute.xlu0 %929
        %v931 = vsel %vm526, %v924, %v928
        %v932 = vsel %vm526, %v926, %v930
        %v933 = vsel %vm526, %v928, %v924
        %v934 = vsel %vm526, %v930, %v926
        %v935 = vld [vmem:[%s529] ss:$8 sm:$0x3]
        %v937 = vlaneseq
        %v938 = vshrl.u32 %v937, 7
        %v939 = vsub.s32 0, %v938
        %v940 = vrot.slane %v935, %v939
        %v941 = vlaneseq
        %v942 = vshrl.u32 %v941, 7
        %v943 = vsub.s32 1, %v942
        %v944 = vrot.slane %v935, %v943
        %v947 = vmul.f32 %v931, %v940
        %v948 = vmul.f32 %v933, %v944
        %v949 = vmul.f32 %v932, %v940
        %v950 = vmul.f32 %v934, %v944
        %951 = vst [vmem:[#allocation3 + $0xc0] sm:$0xff] %v947
        %952 = vst [vmem:[#allocation3 + $0xc8] sm:$0xff] %v948
        %953 = vst [vmem:[#allocation3 + $0xd0] sm:$0xff] %v949
        %954 = vst [vmem:[#allocation3 + $0xd8] sm:$0xff] %v950
        %v955 = vld [vmem:[#allocation5] sm:$0xff]
        %v956 = vld [vmem:[#allocation5 + $0x8] sm:$0xff]
        %v957 = vld [vmem:[#allocation5 + $0x10] sm:$0xff]
        %v958 = vld [vmem:[#allocation5 + $0x18] sm:$0xff]
        %959 = vrot.lane.b32.xlu0 %v955, 112
        %v960 = vpop.permute.xlu0 %959
        %961 = vrot.lane.b32.xlu0 %v957, 112
        %v962 = vpop.permute.xlu0 %961
        %963 = vrot.lane.b32.xlu0 %v956, 112
        %v964 = vpop.permute.xlu0 %963
        %965 = vrot.lane.b32.xlu0 %v958, 112
        %v966 = vpop.permute.xlu0 %965
        %v967 = vsel %vm554, %v960, %v964
        %v968 = vsel %vm554, %v962, %v966
        %v969 = vsel %vm554, %v964, %v960
        %v970 = vsel %vm554, %v966, %v962
        %v971 = vld [vmem:[%s557] ss:$8 sm:$0x3]
        %v973 = vlaneseq
        %v974 = vshrl.u32 %v973, 7
        %v975 = vsub.s32 0, %v974
        %v976 = vrot.slane %v971, %v975
        %v977 = vlaneseq
        %v978 = vshrl.u32 %v977, 7
        %v979 = vsub.s32 1, %v978
        %v980 = vrot.slane %v971, %v979
        %v983 = vmul.f32 %v967, %v976
        %v984 = vmul.f32 %v969, %v980
        %v985 = vmul.f32 %v968, %v976
        %v986 = vmul.f32 %v970, %v980
        %987 = vst [vmem:[#allocation3 + $0xe0] sm:$0xff] %v983
        %988 = vst [vmem:[#allocation3 + $0xe8] sm:$0xff] %v984
        %989 = vst [vmem:[#allocation3 + $0xf0] sm:$0xff] %v985
        %990 = vst [vmem:[#allocation3 + $0xf8] sm:$0xff] %v986
        %v991 = vld [vmem:[#allocation5] sm:$0xff]
        %v992 = vld [vmem:[#allocation5 + $0x8] sm:$0xff]
        %v993 = vld [vmem:[#allocation5 + $0x10] sm:$0xff]
        %v994 = vld [vmem:[#allocation5 + $0x18] sm:$0xff]
        %995 = vrot.lane.b32.xlu0 %v991, 111
        %v996 = vpop.permute.xlu0 %995
        %997 = vrot.lane.b32.xlu0 %v993, 111
        %v998 = vpop.permute.xlu0 %997
        %999 = vrot.lane.b32.xlu0 %v992, 111
        %v1000 = vpop.permute.xlu0 %999
        %1001 = vrot.lane.b32.xlu0 %v994, 111
        %v1002 = vpop.permute.xlu0 %1001
        %v1003 = vsel %vm588, %v996, %v1000
        %v1004 = vsel %vm588, %v998, %v1002
        %v1005 = vsel %vm588, %v1000, %v996
        %v1006 = vsel %vm588, %v1002, %v998
        %v1007 = vld [vmem:[%s591] ss:$8 sm:$0x3]
        %v1009 = vlaneseq
        %v1010 = vshrl.u32 %v1009, 7
        %v1011 = vsub.s32 0, %v1010
        %v1012 = vrot.slane %v1007, %v1011
        %v1013 = vlaneseq
        %v1014 = vshrl.u32 %v1013, 7
        %v1015 = vsub.s32 1, %v1014
        %v1016 = vrot.slane %v1007, %v1015
        %v1019 = vmul.f32 %v1003, %v1012
        %v1020 = vmul.f32 %v1005, %v1016
        %v1021 = vmul.f32 %v1004, %v1012
        %v1022 = vmul.f32 %v1006, %v1016
        %1023 = vst [vmem:[#allocation3 + $0x100] sm:$0xff] %v1019
        %1024 = vst [vmem:[#allocation3 + $0x108] sm:$0xff] %v1020
        %1025 = vst [vmem:[#allocation3 + $0x110] sm:$0xff] %v1021
        %1026 = vst [vmem:[#allocation3 + $0x118] sm:$0xff] %v1022
        %v1027 = vld [vmem:[%s4] sm:$0xff]
        %v1028 = vld [vmem:[%s4 + $0x8] sm:$0xff]
        %v1029 = vld [vmem:[%s4 + $0x10] sm:$0xff]
        %v1030 = vld [vmem:[%s4 + $0x18] sm:$0xff]
        %v1031 = vld [vmem:[%s4 + $0x20] sm:$0xff]
        %v1032 = vld [vmem:[%s4 + $0x28] sm:$0xff]
        %v1033 = vld [vmem:[%s4 + $0x30] sm:$0xff]
        %v1034 = vld [vmem:[%s4 + $0x38] sm:$0xff]
        %v1035 = vld [vmem:[#allocation3] sm:$0xff]
        %v1036 = vld [vmem:[#allocation3 + $0x8] sm:$0xff]
        %v1037 = vld [vmem:[#allocation3 + $0x10] sm:$0xff]
        %v1038 = vld [vmem:[#allocation3 + $0x18] sm:$0xff]
        %v1039 = vld [vmem:[#allocation3 + $0x20] sm:$0xff]
        %v1040 = vld [vmem:[#allocation3 + $0x28] sm:$0xff]
        %v1041 = vld [vmem:[#allocation3 + $0x30] sm:$0xff]
        %v1042 = vld [vmem:[#allocation3 + $0x38] sm:$0xff]
        %v1043 = vld [vmem:[#allocation3 + $0x40] sm:$0xff]
        %v1044 = vld [vmem:[#allocation3 + $0x48] sm:$0xff]
        %v1045 = vld [vmem:[#allocation3 + $0x50] sm:$0xff]
        %v1046 = vld [vmem:[#allocation3 + $0x58] sm:$0xff]
        %v1047 = vld [vmem:[#allocation3 + $0x60] sm:$0xff]
        %v1048 = vld [vmem:[#allocation3 + $0x68] sm:$0xff]
        %v1049 = vld [vmem:[#allocation3 + $0x70] sm:$0xff]
        %v1050 = vld [vmem:[#allocation3 + $0x78] sm:$0xff]
        %v1051 = vld [vmem:[#allocation3 + $0x80] sm:$0xff]
        %v1052 = vld [vmem:[#allocation3 + $0x88] sm:$0xff]
        %v1053 = vld [vmem:[#allocation3 + $0x90] sm:$0xff]
        %v1054 = vld [vmem:[#allocation3 + $0x98] sm:$0xff]
        %v1055 = vld [vmem:[#allocation3 + $0xa0] sm:$0xff]
        %v1056 = vld [vmem:[#allocation3 + $0xa8] sm:$0xff]
        %v1057 = vld [vmem:[#allocation3 + $0xb0] sm:$0xff]
        %v1058 = vld [vmem:[#allocation3 + $0xb8] sm:$0xff]
        %v1059 = vld [vmem:[#allocation3 + $0xc0] sm:$0xff]
        %v1060 = vld [vmem:[#allocation3 + $0xc8] sm:$0xff]
        %v1061 = vld [vmem:[#allocation3 + $0xd0] sm:$0xff]
        %v1062 = vld [vmem:[#allocation3 + $0xd8] sm:$0xff]
        %v1063 = vld [vmem:[#allocation3 + $0xe0] sm:$0xff]
        %v1064 = vld [vmem:[#allocation3 + $0xe8] sm:$0xff]
        %v1065 = vld [vmem:[#allocation3 + $0xf0] sm:$0xff]
        %v1066 = vld [vmem:[#allocation3 + $0xf8] sm:$0xff]
        %v1067 = vld [vmem:[#allocation3 + $0x100] sm:$0xff]
        %v1068 = vld [vmem:[#allocation3 + $0x108] sm:$0xff]
        %v1069 = vld [vmem:[#allocation3 + $0x110] sm:$0xff]
        %v1070 = vld [vmem:[#allocation3 + $0x118] sm:$0xff]
        %v1071 = vld [vmem:[%s5] sm:$0xff]
        %v1072 = vld [vmem:[%s5 + $0x8] sm:$0xff]
        %v1073 = vld [vmem:[%s5 + $0x10] sm:$0xff]
        %v1074 = vld [vmem:[%s5 + $0x18] sm:$0xff]
        %1076 = vset.pattern.permute.xlu0 0
        %1077 = vperm.xlu0 %1076, %v1071
        %v1078 = vpop.permute.xlu0 %1077
        %1081 = vset.pattern.permute.xlu0 0
        %1082 = vperm.xlu0 %1081, %v1072
        %v1083 = vpop.permute.xlu0 %1082
        %1086 = vset.pattern.permute.xlu0 0
        %1087 = vperm.xlu0 %1086, %v1073
        %v1088 = vpop.permute.xlu0 %1087
        %1091 = vset.pattern.permute.xlu0 0
        %1092 = vperm.xlu0 %1091, %v1074
        %v1093 = vpop.permute.xlu0 %1092
        %vm1095 = vcmask 130048
        %v1097 = vsel %vm1095, %v1028, 0
        %v1100 = vsel %vm1095, %v1030, 0
        %v1103 = vsel %vm1095, %v1032, 0
        %v1106 = vsel %vm1095, %v1034, 0
        %1108 = vmatprep.subr.mxu0 %v1036
        %1109 = vmatpush1.msra.mxu0 %v1035
        %1110 = vmatprep.subr.mxu0 %v1038
        %1111 = vmatpush1.msra.mxu0 %v1037
        %1112 = vmatprep.subr.mxu0 %v1040
        %1113 = vmatpush1.msra.mxu0 %v1039
        %1114 = vmatprep.subr.mxu0 %v1042
        %1115 = vmatpush1.msra.mxu0 %v1041
        %1116 = vmatprep.subr.mxu0 %v1044
        %1117 = vmatpush1.msra.mxu0 %v1043
        %1118 = vmatprep.subr.mxu0 %v1046
        %1119 = vmatpush1.msra.mxu0 %v1045
        %1120 = vmatprep.subr.mxu0 %v1048
        %1121 = vmatpush1.msra.mxu0 %v1047
        %1122 = vmatprep.subr.mxu0 %v1050
        %1123 = vmatpush1.msra.mxu0 %v1049
        %1124 = vmatprep.subr.mxu0 %v1052
        %1125 = vmatpush1.msra.mxu0 %v1051
        %1126 = vmatprep.subr.mxu0 %v1054
        %1127 = vmatpush1.msra.mxu0 %v1053
        %1128 = vmatprep.subr.mxu0 %v1056
        %1129 = vmatpush1.msra.mxu0 %v1055
        %1130 = vmatprep.subr.mxu0 %v1058
        %1131 = vmatpush1.msra.mxu0 %v1057
        %1132 = vmatprep.subr.mxu0 %v1060
        %1133 = vmatpush1.msra.mxu0 %v1059
        %1134 = vmatprep.subr.mxu0 %v1062
        %1135 = vmatpush1.msra.mxu0 %v1061
        %1136 = vmatprep.subr.mxu0 %v1064
        %1137 = vmatpush1.msra.mxu0 %v1063
        %1138 = vmatprep.subr.mxu0 %v1066
        %1139 = vmatpush1.msra.mxu0 %v1065
        %1140 = vmatprep.subr.mxu0 %v1068
        %1141 = vmatpush1.msra.mxu0 %v1067
        %1142 = vmatprep.subr.mxu0 %v1070
        %1143 = vmatpush1.msra.mxu0 %v1069
        %1144 = vmatprep.subr.mxu0 0.0
        %1145 = vmatpush1.msra.mxu0 0.0
        %1146 = vmatprep.subr.mxu0 0.0
        %1147 = vmatpush1.msra.mxu0 0.0
        %1148 = vmatprep.subr.mxu0 0.0
        %1149 = vmatpush1.msra.mxu0 0.0
        %1150 = vmatprep.subr.mxu0 0.0
        %1151 = vmatpush1.msra.mxu0 0.0
        %1152 = vmatprep.subr.mxu0 0.0
        %1153 = vmatpush1.msra.mxu0 0.0
        %1154 = vmatprep.subr.mxu0 0.0
        %1155 = vmatpush1.msra.mxu0 0.0
        %1156 = vmatprep.subr.mxu0 0.0
        %1157 = vmatpush1.msra.mxu0 0.0
        %1158 = vmatprep.subr.mxu0 0.0
        %1159 = vmatpush1.msra.mxu0 0.0
        %1160 = vmatprep.subr.mxu0 0.0
        %1161 = vmatpush1.msra.mxu0 0.0
        %1162 = vmatprep.subr.mxu0 0.0
        %1163 = vmatpush1.msra.mxu0 0.0
        %1164 = vmatprep.subr.mxu0 0.0
        %1165 = vmatpush1.msra.mxu0 0.0
        %1166 = vmatprep.subr.mxu0 0.0
        %1167 = vmatpush1.msra.mxu0 0.0
        %1168 = vmatprep.subr.mxu0 0.0
        %1169 = vmatpush1.msra.mxu0 0.0
        %1170 = vmatprep.subr.mxu0 0.0
        %1171 = vmatpush1.msra.mxu0 0.0
        %1172 = vmatprep.mubr.f32.mxu0 %v1097
        %1173 = vmatmul.mubr.f32.gmra.mrb[0].mxu0 %v1027
        %v1174 = vpop.f32.mrb[0].mxu0
        %v1175 = vadd.f32 %v1078, %v1174
        %v1176 = vpop.f32.mrb[0].mxu0
        %v1177 = vadd.f32 %v1078, %v1176
        %1178 = vmatprep.mubr.f32.mxu0 %v1100
        %1179 = vmatmul.mubr.f32.gmra.mrb[0].mxu0 %v1029
        %v1180 = vpop.f32.mrb[0].mxu0
        %v1181 = vadd.f32 %v1083, %v1180
        %v1182 = vpop.f32.mrb[0].mxu0
        %v1183 = vadd.f32 %v1083, %v1182
        %1184 = vmatprep.mubr.f32.mxu0 %v1103
        %1185 = vmatmul.mubr.f32.gmra.mrb[0].mxu0 %v1031
        %v1186 = vpop.f32.mrb[0].mxu0
        %v1187 = vadd.f32 %v1088, %v1186
        %v1188 = vpop.f32.mrb[0].mxu0
        %v1189 = vadd.f32 %v1088, %v1188
        %1190 = vmatprep.mubr.f32.mxu0 %v1106
        %1191 = vmatmul.mubr.f32.gmra.mrb[0].mxu0 %v1033
        %v1192 = vpop.f32.mrb[0].mxu0
        %v1193 = vadd.f32 %v1093, %v1192
        %v1194 = vpop.f32.mrb[0].mxu0
        %v1195 = vadd.f32 %v1093, %v1194
        %1196 = vdwg.mxu0
        %v1197 = vmax.f32 %v1175, 0.0
        %v1198 = vmax.f32 %v1177, 0.0
        %v1199 = vmax.f32 %v1181, 0.0
        %v1200 = vmax.f32 %v1183, 0.0
        %v1201 = vmax.f32 %v1187, 0.0
        %v1202 = vmax.f32 %v1189, 0.0
        %v1203 = vmax.f32 %v1193, 0.0
        %v1204 = vmax.f32 %v1195, 0.0
        %1205 = vst [vmem:[#allocation6] sm:$0xff] %v1197
        %1206 = vst [vmem:[#allocation6 + $0x8] sm:$0xff] %v1198
        %1207 = vst [vmem:[#allocation6 + $0x10] sm:$0xff] %v1199
        %1208 = vst [vmem:[#allocation6 + $0x18] sm:$0xff] %v1200
        %1209 = vst [vmem:[#allocation6 + $0x20] sm:$0xff] %v1201
        %1210 = vst [vmem:[#allocation6 + $0x28] sm:$0xff] %v1202
        %1211 = vst [vmem:[#allocation6 + $0x30] sm:$0xff] %v1203
        %1212 = vst [vmem:[#allocation6 + $0x38] sm:$0xff] %v1204
        %v1213 = vld [vmem:[#allocation6] sm:$0xff]
        %v1214 = vld [vmem:[#allocation6 + $0x8] sm:$0xff]
        %v1215 = vld [vmem:[#allocation6 + $0x10] sm:$0xff]
        %v1216 = vld [vmem:[#allocation6 + $0x18] sm:$0xff]
        %v1217 = vld [vmem:[#allocation6 + $0x20] sm:$0xff]
        %v1218 = vld [vmem:[#allocation6 + $0x28] sm:$0xff]
        %v1219 = vld [vmem:[#allocation6 + $0x30] sm:$0xff]
        %v1220 = vld [vmem:[#allocation6 + $0x38] sm:$0xff]
        %1221 = vrot.lane.b32.xlu0 %v1213, 17
        %v1222 = vpop.permute.xlu0 %1221
        %1223 = vrot.lane.b32.xlu0 %v1215, 17
        %v1224 = vpop.permute.xlu0 %1223
        %1225 = vrot.lane.b32.xlu0 %v1217, 17
        %v1226 = vpop.permute.xlu0 %1225
        %1227 = vrot.lane.b32.xlu0 %v1219, 17
        %v1228 = vpop.permute.xlu0 %1227
        %1229 = vrot.lane.b32.xlu0 %v1214, 17
        %v1230 = vpop.permute.xlu0 %1229
        %1231 = vrot.lane.b32.xlu0 %v1216, 17
        %v1232 = vpop.permute.xlu0 %1231
        %1233 = vrot.lane.b32.xlu0 %v1218, 17
        %v1234 = vpop.permute.xlu0 %1233
        %1235 = vrot.lane.b32.xlu0 %v1220, 17
        %v1236 = vpop.permute.xlu0 %1235
        %v1237 = vsel %vm363, %v1222, %v1230
        %v1238 = vsel %vm363, %v1224, %v1232
        %v1239 = vsel %vm363, %v1226, %v1234
        %v1240 = vsel %vm363, %v1228, %v1236
        %v1241 = vsel %vm363, %v1230, %v1222
        %v1242 = vsel %vm363, %v1232, %v1224
        %v1243 = vsel %vm363, %v1234, %v1226
        %v1244 = vsel %vm363, %v1236, %v1228
        %v1245 = vld [vmem:[#allocation10] ss:$8 sm:$0x3]
        %v1247 = vlaneseq
        %v1248 = vshrl.u32 %v1247, 7
        %v1249 = vsub.s32 0, %v1248
        %v1250 = vrot.slane %v1245, %v1249
        %v1251 = vlaneseq
        %v1252 = vshrl.u32 %v1251, 7
        %v1253 = vsub.s32 1, %v1252
        %v1254 = vrot.slane %v1245, %v1253
        %v1257 = vmul.f32 %v1241, %v1250
        %v1258 = vmul.f32 %v1237, %v1254
        %v1259 = vmul.f32 %v1242, %v1250
        %v1260 = vmul.f32 %v1238, %v1254
        %v1261 = vmul.f32 %v1243, %v1250
        %v1262 = vmul.f32 %v1239, %v1254
        %v1263 = vmul.f32 %v1244, %v1250
        %v1264 = vmul.f32 %v1240, %v1254
        %1265 = vst [vmem:[#allocation4] sm:$0xff] %v1257
        %1266 = vst [vmem:[#allocation4 + $0x8] sm:$0xff] %v1258
        %1267 = vst [vmem:[#allocation4 + $0x10] sm:$0xff] %v1259
        %1268 = vst [vmem:[#allocation4 + $0x18] sm:$0xff] %v1260
        %1269 = vst [vmem:[#allocation4 + $0x20] sm:$0xff] %v1261
        %1270 = vst [vmem:[#allocation4 + $0x28] sm:$0xff] %v1262
        %1271 = vst [vmem:[#allocation4 + $0x30] sm:$0xff] %v1263
        %1272 = vst [vmem:[#allocation4 + $0x38] sm:$0xff] %v1264
        %v1273 = vld [vmem:[#allocation6] sm:$0xff]
        %v1274 = vld [vmem:[#allocation6 + $0x8] sm:$0xff]
        %v1275 = vld [vmem:[#allocation6 + $0x10] sm:$0xff]
        %v1276 = vld [vmem:[#allocation6 + $0x18] sm:$0xff]
        %v1277 = vld [vmem:[#allocation6 + $0x20] sm:$0xff]
        %v1278 = vld [vmem:[#allocation6 + $0x28] sm:$0xff]
        %v1279 = vld [vmem:[#allocation6 + $0x30] sm:$0xff]
        %v1280 = vld [vmem:[#allocation6 + $0x38] sm:$0xff]
        %1281 = vrot.lane.b32.xlu0 %v1273, 16
        %v1282 = vpop.permute.xlu0 %1281
        %1283 = vrot.lane.b32.xlu0 %v1275, 16
        %v1284 = vpop.permute.xlu0 %1283
        %1285 = vrot.lane.b32.xlu0 %v1277, 16
        %v1286 = vpop.permute.xlu0 %1285
        %1287 = vrot.lane.b32.xlu0 %v1279, 16
        %v1288 = vpop.permute.xlu0 %1287
        %1289 = vrot.lane.b32.xlu0 %v1274, 16
        %v1290 = vpop.permute.xlu0 %1289
        %1291 = vrot.lane.b32.xlu0 %v1276, 16
        %v1292 = vpop.permute.xlu0 %1291
        %1293 = vrot.lane.b32.xlu0 %v1278, 16
        %v1294 = vpop.permute.xlu0 %1293
        %1295 = vrot.lane.b32.xlu0 %v1280, 16
        %v1296 = vpop.permute.xlu0 %1295
        %v1297 = vsel %vm390, %v1282, %v1290
        %v1298 = vsel %vm390, %v1284, %v1292
        %v1299 = vsel %vm390, %v1286, %v1294
        %v1300 = vsel %vm390, %v1288, %v1296
        %v1301 = vsel %vm390, %v1290, %v1282
        %v1302 = vsel %vm390, %v1292, %v1284
        %v1303 = vsel %vm390, %v1294, %v1286
        %v1304 = vsel %vm390, %v1296, %v1288
        %v1305 = vld [vmem:[%s393] ss:$8 sm:$0x3]
        %v1307 = vlaneseq
        %v1308 = vshrl.u32 %v1307, 7
        %v1309 = vsub.s32 0, %v1308
        %v1310 = vrot.slane %v1305, %v1309
        %v1311 = vlaneseq
        %v1312 = vshrl.u32 %v1311, 7
        %v1313 = vsub.s32 1, %v1312
        %v1314 = vrot.slane %v1305, %v1313
        %v1317 = vmul.f32 %v1301, %v1310
        %v1318 = vmul.f32 %v1297, %v1314
        %v1319 = vmul.f32 %v1302, %v1310
        %v1320 = vmul.f32 %v1298, %v1314
        %v1321 = vmul.f32 %v1303, %v1310
        %v1322 = vmul.f32 %v1299, %v1314
        %v1323 = vmul.f32 %v1304, %v1310
        %v1324 = vmul.f32 %v1300, %v1314
        %1325 = vst [vmem:[#allocation4 + $0x40] sm:$0xff] %v1317
        %1326 = vst [vmem:[#allocation4 + $0x48] sm:$0xff] %v1318
        %1327 = vst [vmem:[#allocation4 + $0x50] sm:$0xff] %v1319
        %1328 = vst [vmem:[#allocation4 + $0x58] sm:$0xff] %v1320
        %1329 = vst [vmem:[#allocation4 + $0x60] sm:$0xff] %v1321
        %1330 = vst [vmem:[#allocation4 + $0x68] sm:$0xff] %v1322
        %1331 = vst [vmem:[#allocation4 + $0x70] sm:$0xff] %v1323
        %1332 = vst [vmem:[#allocation4 + $0x78] sm:$0xff] %v1324
        %v1333 = vld [vmem:[#allocation6] sm:$0xff]
        %v1334 = vld [vmem:[#allocation6 + $0x8] sm:$0xff]
        %v1335 = vld [vmem:[#allocation6 + $0x10] sm:$0xff]
        %v1336 = vld [vmem:[#allocation6 + $0x18] sm:$0xff]
        %v1337 = vld [vmem:[#allocation6 + $0x20] sm:$0xff]
        %v1338 = vld [vmem:[#allocation6 + $0x28] sm:$0xff]
        %v1339 = vld [vmem:[#allocation6 + $0x30] sm:$0xff]
        %v1340 = vld [vmem:[#allocation6 + $0x38] sm:$0xff]
        %1341 = vrot.lane.b32.xlu0 %v1333, 15
        %v1342 = vpop.permute.xlu0 %1341
        %1343 = vrot.lane.b32.xlu0 %v1335, 15
        %v1344 = vpop.permute.xlu0 %1343
        %1345 = vrot.lane.b32.xlu0 %v1337, 15
        %v1346 = vpop.permute.xlu0 %1345
        %1347 = vrot.lane.b32.xlu0 %v1339, 15
        %v1348 = vpop.permute.xlu0 %1347
        %1349 = vrot.lane.b32.xlu0 %v1334, 15
        %v1350 = vpop.permute.xlu0 %1349
        %1351 = vrot.lane.b32.xlu0 %v1336, 15
        %v1352 = vpop.permute.xlu0 %1351
        %1353 = vrot.lane.b32.xlu0 %v1338, 15
        %v1354 = vpop.permute.xlu0 %1353
        %1355 = vrot.lane.b32.xlu0 %v1340, 15
        %v1356 = vpop.permute.xlu0 %1355
        %v1357 = vsel %vm424, %v1342, %v1350
        %v1358 = vsel %vm424, %v1344, %v1352
        %v1359 = vsel %vm424, %v1346, %v1354
        %v1360 = vsel %vm424, %v1348, %v1356
        %v1361 = vsel %vm424, %v1350, %v1342
        %v1362 = vsel %vm424, %v1352, %v1344
        %v1363 = vsel %vm424, %v1354, %v1346
        %v1364 = vsel %vm424, %v1356, %v1348
        %v1365 = vld [vmem:[%s427] ss:$8 sm:$0x3]
        %v1367 = vlaneseq
        %v1368 = vshrl.u32 %v1367, 7
        %v1369 = vsub.s32 0, %v1368
        %v1370 = vrot.slane %v1365, %v1369
        %v1371 = vlaneseq
        %v1372 = vshrl.u32 %v1371, 7
        %v1373 = vsub.s32 1, %v1372
        %v1374 = vrot.slane %v1365, %v1373
        %v1377 = vmul.f32 %v1361, %v1370
        %v1378 = vmul.f32 %v1357, %v1374
        %v1379 = vmul.f32 %v1362, %v1370
        %v1380 = vmul.f32 %v1358, %v1374
        %v1381 = vmul.f32 %v1363, %v1370
        %v1382 = vmul.f32 %v1359, %v1374
        %v1383 = vmul.f32 %v1364, %v1370
        %v1384 = vmul.f32 %v1360, %v1374
        %1385 = vst [vmem:[#allocation4 + $0x80] sm:$0xff] %v1377
        %1386 = vst [vmem:[#allocation4 + $0x88] sm:$0xff] %v1378
        %1387 = vst [vmem:[#allocation4 + $0x90] sm:$0xff] %v1379
        %1388 = vst [vmem:[#allocation4 + $0x98] sm:$0xff] %v1380
        %1389 = vst [vmem:[#allocation4 + $0xa0] sm:$0xff] %v1381
        %1390 = vst [vmem:[#allocation4 + $0xa8] sm:$0xff] %v1382
        %1391 = vst [vmem:[#allocation4 + $0xb0] sm:$0xff] %v1383
        %1392 = vst [vmem:[#allocation4 + $0xb8] sm:$0xff] %v1384
        %v1393 = vld [vmem:[#allocation6] sm:$0xff]
        %v1394 = vld [vmem:[#allocation6 + $0x8] sm:$0xff]
        %v1395 = vld [vmem:[#allocation6 + $0x10] sm:$0xff]
        %v1396 = vld [vmem:[#allocation6 + $0x18] sm:$0xff]
        %v1397 = vld [vmem:[#allocation6 + $0x20] sm:$0xff]
        %v1398 = vld [vmem:[#allocation6 + $0x28] sm:$0xff]
        %v1399 = vld [vmem:[#allocation6 + $0x30] sm:$0xff]
        %v1400 = vld [vmem:[#allocation6 + $0x38] sm:$0xff]
        %1401 = vrot.lane.b32.xlu0 %v1393, 1
        %v1402 = vpop.permute.xlu0 %1401
        %1403 = vrot.lane.b32.xlu0 %v1395, 1
        %v1404 = vpop.permute.xlu0 %1403
        %1405 = vrot.lane.b32.xlu0 %v1397, 1
        %v1406 = vpop.permute.xlu0 %1405
        %1407 = vrot.lane.b32.xlu0 %v1399, 1
        %v1408 = vpop.permute.xlu0 %1407
        %1409 = vrot.lane.b32.xlu0 %v1394, 1
        %v1410 = vpop.permute.xlu0 %1409
        %1411 = vrot.lane.b32.xlu0 %v1396, 1
        %v1412 = vpop.permute.xlu0 %1411
        %1413 = vrot.lane.b32.xlu0 %v1398, 1
        %v1414 = vpop.permute.xlu0 %1413
        %1415 = vrot.lane.b32.xlu0 %v1400, 1
        %v1416 = vpop.permute.xlu0 %1415
        %v1417 = vsel %vm452, %v1402, %v1410
        %v1418 = vsel %vm452, %v1404, %v1412
        %v1419 = vsel %vm452, %v1406, %v1414
        %v1420 = vsel %vm452, %v1408, %v1416
        %v1421 = vsel %vm452, %v1410, %v1402
        %v1422 = vsel %vm452, %v1412, %v1404
        %v1423 = vsel %vm452, %v1414, %v1406
        %v1424 = vsel %vm452, %v1416, %v1408
        %v1425 = vld [vmem:[%s455] ss:$8 sm:$0x3]
        %v1427 = vlaneseq
        %v1428 = vshrl.u32 %v1427, 7
        %v1429 = vsub.s32 0, %v1428
        %v1430 = vrot.slane %v1425, %v1429
        %v1431 = vlaneseq
        %v1432 = vshrl.u32 %v1431, 7
        %v1433 = vsub.s32 1, %v1432
        %v1434 = vrot.slane %v1425, %v1433
        %v1437 = vmul.f32 %v1421, %v1430
        %v1438 = vmul.f32 %v1417, %v1434
        %v1439 = vmul.f32 %v1422, %v1430
        %v1440 = vmul.f32 %v1418, %v1434
        %v1441 = vmul.f32 %v1423, %v1430
        %v1442 = vmul.f32 %v1419, %v1434
        %v1443 = vmul.f32 %v1424, %v1430
        %v1444 = vmul.f32 %v1420, %v1434
        %1445 = vst [vmem:[#allocation4 + $0xc0] sm:$0xff] %v1437
        %1446 = vst [vmem:[#allocation4 + $0xc8] sm:$0xff] %v1438
        %1447 = vst [vmem:[#allocation4 + $0xd0] sm:$0xff] %v1439
        %1448 = vst [vmem:[#allocation4 + $0xd8] sm:$0xff] %v1440
        %1449 = vst [vmem:[#allocation4 + $0xe0] sm:$0xff] %v1441
        %1450 = vst [vmem:[#allocation4 + $0xe8] sm:$0xff] %v1442
        %1451 = vst [vmem:[#allocation4 + $0xf0] sm:$0xff] %v1443
        %1452 = vst [vmem:[#allocation4 + $0xf8] sm:$0xff] %v1444
        %v1453 = vld [vmem:[#allocation6] sm:$0xff]
        %v1454 = vld [vmem:[#allocation6 + $0x8] sm:$0xff]
        %v1455 = vld [vmem:[#allocation6 + $0x10] sm:$0xff]
        %v1456 = vld [vmem:[#allocation6 + $0x18] sm:$0xff]
        %v1457 = vld [vmem:[#allocation6 + $0x20] sm:$0xff]
        %v1458 = vld [vmem:[#allocation6 + $0x28] sm:$0xff]
        %v1459 = vld [vmem:[#allocation6 + $0x30] sm:$0xff]
        %v1460 = vld [vmem:[#allocation6 + $0x38] sm:$0xff]
        %1461 = vst [vmem:[#allocation4 + $0x100] sm:$0xff] %v1453
        %1462 = vst [vmem:[#allocation4 + $0x108] sm:$0xff] %v1454
        %1463 = vst [vmem:[#allocation4 + $0x110] sm:$0xff] %v1455
        %1464 = vst [vmem:[#allocation4 + $0x118] sm:$0xff] %v1456
        %1465 = vst [vmem:[#allocation4 + $0x120] sm:$0xff] %v1457
        %1466 = vst [vmem:[#allocation4 + $0x128] sm:$0xff] %v1458
        %1467 = vst [vmem:[#allocation4 + $0x130] sm:$0xff] %v1459
        %1468 = vst [vmem:[#allocation4 + $0x138] sm:$0xff] %v1460
        %v1469 = vld [vmem:[#allocation6] sm:$0xff]
        %v1470 = vld [vmem:[#allocation6 + $0x8] sm:$0xff]
        %v1471 = vld [vmem:[#allocation6 + $0x10] sm:$0xff]
        %v1472 = vld [vmem:[#allocation6 + $0x18] sm:$0xff]
        %v1473 = vld [vmem:[#allocation6 + $0x20] sm:$0xff]
        %v1474 = vld [vmem:[#allocation6 + $0x28] sm:$0xff]
        %v1475 = vld [vmem:[#allocation6 + $0x30] sm:$0xff]
        %v1476 = vld [vmem:[#allocation6 + $0x38] sm:$0xff]
        %1477 = vrot.lane.b32.xlu0 %v1469, 127
        %v1478 = vpop.permute.xlu0 %1477
        %1479 = vrot.lane.b32.xlu0 %v1471, 127
        %v1480 = vpop.permute.xlu0 %1479
        %1481 = vrot.lane.b32.xlu0 %v1473, 127
        %v1482 = vpop.permute.xlu0 %1481
        %1483 = vrot.lane.b32.xlu0 %v1475, 127
        %v1484 = vpop.permute.xlu0 %1483
        %1485 = vrot.lane.b32.xlu0 %v1470, 127
        %v1486 = vpop.permute.xlu0 %1485
        %1487 = vrot.lane.b32.xlu0 %v1472, 127
        %v1488 = vpop.permute.xlu0 %1487
        %1489 = vrot.lane.b32.xlu0 %v1474, 127
        %v1490 = vpop.permute.xlu0 %1489
        %1491 = vrot.lane.b32.xlu0 %v1476, 127
        %v1492 = vpop.permute.xlu0 %1491
        %v1493 = vsel %vm492, %v1478, %v1486
        %v1494 = vsel %vm492, %v1480, %v1488
        %v1495 = vsel %vm492, %v1482, %v1490
        %v1496 = vsel %vm492, %v1484, %v1492
        %v1497 = vsel %vm492, %v1486, %v1478
        %v1498 = vsel %vm492, %v1488, %v1480
        %v1499 = vsel %vm492, %v1490, %v1482
        %v1500 = vsel %vm492, %v1492, %v1484
        %v1501 = vld [vmem:[%s495] ss:$8 sm:$0x3]
        %v1503 = vlaneseq
        %v1504 = vshrl.u32 %v1503, 7
        %v1505 = vsub.s32 0, %v1504
        %v1506 = vrot.slane %v1501, %v1505
        %v1507 = vlaneseq
        %v1508 = vshrl.u32 %v1507, 7
        %v1509 = vsub.s32 1, %v1508
        %v1510 = vrot.slane %v1501, %v1509
        %v1513 = vmul.f32 %v1493, %v1506
        %v1514 = vmul.f32 %v1497, %v1510
        %v1515 = vmul.f32 %v1494, %v1506
        %v1516 = vmul.f32 %v1498, %v1510
        %v1517 = vmul.f32 %v1495, %v1506
        %v1518 = vmul.f32 %v1499, %v1510
        %v1519 = vmul.f32 %v1496, %v1506
        %v1520 = vmul.f32 %v1500, %v1510
        %1521 = vst [vmem:[#allocation4 + $0x140] sm:$0xff] %v1513
        %1522 = vst [vmem:[#allocation4 + $0x148] sm:$0xff] %v1514
        %1523 = vst [vmem:[#allocation4 + $0x150] sm:$0xff] %v1515
        %1524 = vst [vmem:[#allocation4 + $0x158] sm:$0xff] %v1516
        %1525 = vst [vmem:[#allocation4 + $0x160] sm:$0xff] %v1517
        %1526 = vst [vmem:[#allocation4 + $0x168] sm:$0xff] %v1518
        %1527 = vst [vmem:[#allocation4 + $0x170] sm:$0xff] %v1519
        %1528 = vst [vmem:[#allocation4 + $0x178] sm:$0xff] %v1520
        %v1529 = vld [vmem:[#allocation6] sm:$0xff]
        %v1530 = vld [vmem:[#allocation6 + $0x8] sm:$0xff]
        %v1531 = vld [vmem:[#allocation6 + $0x10] sm:$0xff]
        %v1532 = vld [vmem:[#allocation6 + $0x18] sm:$0xff]
        %v1533 = vld [vmem:[#allocation6 + $0x20] sm:$0xff]
        %v1534 = vld [vmem:[#allocation6 + $0x28] sm:$0xff]
        %v1535 = vld [vmem:[#allocation6 + $0x30] sm:$0xff]
        %v1536 = vld [vmem:[#allocation6 + $0x38] sm:$0xff]
        %1537 = vrot.lane.b32.xlu0 %v1529, 113
        %v1538 = vpop.permute.xlu0 %1537
        %1539 = vrot.lane.b32.xlu0 %v1531, 113
        %v1540 = vpop.permute.xlu0 %1539
        %1541 = vrot.lane.b32.xlu0 %v1533, 113
        %v1542 = vpop.permute.xlu0 %1541
        %1543 = vrot.lane.b32.xlu0 %v1535, 113
        %v1544 = vpop.permute.xlu0 %1543
        %1545 = vrot.lane.b32.xlu0 %v1530, 113
        %v1546 = vpop.permute.xlu0 %1545
        %1547 = vrot.lane.b32.xlu0 %v1532, 113
        %v1548 = vpop.permute.xlu0 %1547
        %1549 = vrot.lane.b32.xlu0 %v1534, 113
        %v1550 = vpop.permute.xlu0 %1549
        %1551 = vrot.lane.b32.xlu0 %v1536, 113
        %v1552 = vpop.permute.xlu0 %1551
        %v1553 = vsel %vm526, %v1538, %v1546
        %v1554 = vsel %vm526, %v1540, %v1548
        %v1555 = vsel %vm526, %v1542, %v1550
        %v1556 = vsel %vm526, %v1544, %v1552
        %v1557 = vsel %vm526, %v1546, %v1538
        %v1558 = vsel %vm526, %v1548, %v1540
        %v1559 = vsel %vm526, %v1550, %v1542
        %v1560 = vsel %vm526, %v1552, %v1544
        %v1561 = vld [vmem:[%s529] ss:$8 sm:$0x3]
        %v1563 = vlaneseq
        %v1564 = vshrl.u32 %v1563, 7
        %v1565 = vsub.s32 0, %v1564
        %v1566 = vrot.slane %v1561, %v1565
        %v1567 = vlaneseq
        %v1568 = vshrl.u32 %v1567, 7
        %v1569 = vsub.s32 1, %v1568
        %v1570 = vrot.slane %v1561, %v1569
        %v1573 = vmul.f32 %v1553, %v1566
        %v1574 = vmul.f32 %v1557, %v1570
        %v1575 = vmul.f32 %v1554, %v1566
        %v1576 = vmul.f32 %v1558, %v1570
        %v1577 = vmul.f32 %v1555, %v1566
        %v1578 = vmul.f32 %v1559, %v1570
        %v1579 = vmul.f32 %v1556, %v1566
        %v1580 = vmul.f32 %v1560, %v1570
        %1581 = vst [vmem:[#allocation4 + $0x180] sm:$0xff] %v1573
        %1582 = vst [vmem:[#allocation4 + $0x188] sm:$0xff] %v1574
        %1583 = vst [vmem:[#allocation4 + $0x190] sm:$0xff] %v1575
        %1584 = vst [vmem:[#allocation4 + $0x198] sm:$0xff] %v1576
        %1585 = vst [vmem:[#allocation4 + $0x1a0] sm:$0xff] %v1577
        %1586 = vst [vmem:[#allocation4 + $0x1a8] sm:$0xff] %v1578
        %1587 = vst [vmem:[#allocation4 + $0x1b0] sm:$0xff] %v1579
        %1588 = vst [vmem:[#allocation4 + $0x1b8] sm:$0xff] %v1580
        %v1589 = vld [vmem:[#allocation6] sm:$0xff]
        %v1590 = vld [vmem:[#allocation6 + $0x8] sm:$0xff]
        %v1591 = vld [vmem:[#allocation6 + $0x10] sm:$0xff]
        %v1592 = vld [vmem:[#allocation6 + $0x18] sm:$0xff]
        %v1593 = vld [vmem:[#allocation6 + $0x20] sm:$0xff]
        %v1594 = vld [vmem:[#allocation6 + $0x28] sm:$0xff]
        %v1595 = vld [vmem:[#allocation6 + $0x30] sm:$0xff]
        %v1596 = vld [vmem:[#allocation6 + $0x38] sm:$0xff]
        %1597 = vrot.lane.b32.xlu0 %v1589, 112
        %v1598 = vpop.permute.xlu0 %1597
        %1599 = vrot.lane.b32.xlu0 %v1591, 112
        %v1600 = vpop.permute.xlu0 %1599
        %1601 = vrot.lane.b32.xlu0 %v1593, 112
        %v1602 = vpop.permute.xlu0 %1601
        %1603 = vrot.lane.b32.xlu0 %v1595, 112
        %v1604 = vpop.permute.xlu0 %1603
        %1605 = vrot.lane.b32.xlu0 %v1590, 112
        %v1606 = vpop.permute.xlu0 %1605
        %1607 = vrot.lane.b32.xlu0 %v1592, 112
        %v1608 = vpop.permute.xlu0 %1607
        %1609 = vrot.lane.b32.xlu0 %v1594, 112
        %v1610 = vpop.permute.xlu0 %1609
        %1611 = vrot.lane.b32.xlu0 %v1596, 112
        %v1612 = vpop.permute.xlu0 %1611
        %v1613 = vsel %vm554, %v1598, %v1606
        %v1614 = vsel %vm554, %v1600, %v1608
        %v1615 = vsel %vm554, %v1602, %v1610
        %v1616 = vsel %vm554, %v1604, %v1612
        %v1617 = vsel %vm554, %v1606, %v1598
        %v1618 = vsel %vm554, %v1608, %v1600
        %v1619 = vsel %vm554, %v1610, %v1602
        %v1620 = vsel %vm554, %v1612, %v1604
        %v1621 = vld [vmem:[%s557] ss:$8 sm:$0x3]
        %v1623 = vlaneseq
        %v1624 = vshrl.u32 %v1623, 7
        %v1625 = vsub.s32 0, %v1624
        %v1626 = vrot.slane %v1621, %v1625
        %v1627 = vlaneseq
        %v1628 = vshrl.u32 %v1627, 7
        %v1629 = vsub.s32 1, %v1628
        %v1630 = vrot.slane %v1621, %v1629
        %v1633 = vmul.f32 %v1613, %v1626
        %v1634 = vmul.f32 %v1617, %v1630
        %v1635 = vmul.f32 %v1614, %v1626
        %v1636 = vmul.f32 %v1618, %v1630
        %v1637 = vmul.f32 %v1615, %v1626
        %v1638 = vmul.f32 %v1619, %v1630
        %v1639 = vmul.f32 %v1616, %v1626
        %v1640 = vmul.f32 %v1620, %v1630
        %1641 = vst [vmem:[#allocation4 + $0x1c0] sm:$0xff] %v1633
        %1642 = vst [vmem:[#allocation4 + $0x1c8] sm:$0xff] %v1634
        %1643 = vst [vmem:[#allocation4 + $0x1d0] sm:$0xff] %v1635
        %1644 = vst [vmem:[#allocation4 + $0x1d8] sm:$0xff] %v1636
        %1645 = vst [vmem:[#allocation4 + $0x1e0] sm:$0xff] %v1637
        %1646 = vst [vmem:[#allocation4 + $0x1e8] sm:$0xff] %v1638
        %1647 = vst [vmem:[#allocation4 + $0x1f0] sm:$0xff] %v1639
        %1648 = vst [vmem:[#allocation4 + $0x1f8] sm:$0xff] %v1640
        %v1649 = vld [vmem:[#allocation6] sm:$0xff]
        %v1650 = vld [vmem:[#allocation6 + $0x8] sm:$0xff]
        %v1651 = vld [vmem:[#allocation6 + $0x10] sm:$0xff]
        %v1652 = vld [vmem:[#allocation6 + $0x18] sm:$0xff]
        %v1653 = vld [vmem:[#allocation6 + $0x20] sm:$0xff]
        %v1654 = vld [vmem:[#allocation6 + $0x28] sm:$0xff]
        %v1655 = vld [vmem:[#allocation6 + $0x30] sm:$0xff]
        %v1656 = vld [vmem:[#allocation6 + $0x38] sm:$0xff]
        %1657 = vrot.lane.b32.xlu0 %v1649, 111
        %v1658 = vpop.permute.xlu0 %1657
        %1659 = vrot.lane.b32.xlu0 %v1651, 111
        %v1660 = vpop.permute.xlu0 %1659
        %1661 = vrot.lane.b32.xlu0 %v1653, 111
        %v1662 = vpop.permute.xlu0 %1661
        %1663 = vrot.lane.b32.xlu0 %v1655, 111
        %v1664 = vpop.permute.xlu0 %1663
        %1665 = vrot.lane.b32.xlu0 %v1650, 111
        %v1666 = vpop.permute.xlu0 %1665
        %1667 = vrot.lane.b32.xlu0 %v1652, 111
        %v1668 = vpop.permute.xlu0 %1667
        %1669 = vrot.lane.b32.xlu0 %v1654, 111
        %v1670 = vpop.permute.xlu0 %1669
        %1671 = vrot.lane.b32.xlu0 %v1656, 111
        %v1672 = vpop.permute.xlu0 %1671
        %v1673 = vsel %vm588, %v1658, %v1666
        %v1674 = vsel %vm588, %v1660, %v1668
        %v1675 = vsel %vm588, %v1662, %v1670
        %v1676 = vsel %vm588, %v1664, %v1672
        %v1677 = vsel %vm588, %v1666, %v1658
        %v1678 = vsel %vm588, %v1668, %v1660
        %v1679 = vsel %vm588, %v1670, %v1662
        %v1680 = vsel %vm588, %v1672, %v1664
        %v1681 = vld [vmem:[%s591] ss:$8 sm:$0x3]
        %v1683 = vlaneseq
        %v1684 = vshrl.u32 %v1683, 7
        %v1685 = vsub.s32 0, %v1684
        %v1686 = vrot.slane %v1681, %v1685
        %v1687 = vlaneseq
        %v1688 = vshrl.u32 %v1687, 7
        %v1689 = vsub.s32 1, %v1688
        %v1690 = vrot.slane %v1681, %v1689
        %v1693 = vmul.f32 %v1673, %v1686
        %v1694 = vmul.f32 %v1677, %v1690
        %v1695 = vmul.f32 %v1674, %v1686
        %v1696 = vmul.f32 %v1678, %v1690
        %v1697 = vmul.f32 %v1675, %v1686
        %v1698 = vmul.f32 %v1679, %v1690
        %v1699 = vmul.f32 %v1676, %v1686
        %v1700 = vmul.f32 %v1680, %v1690
        %1701 = vst [vmem:[#allocation4 + $0x200] sm:$0xff] %v1693
        %1702 = vst [vmem:[#allocation4 + $0x208] sm:$0xff] %v1694
        %1703 = vst [vmem:[#allocation4 + $0x210] sm:$0xff] %v1695
        %1704 = vst [vmem:[#allocation4 + $0x218] sm:$0xff] %v1696
        %1705 = vst [vmem:[#allocation4 + $0x220] sm:$0xff] %v1697
        %1706 = vst [vmem:[#allocation4 + $0x228] sm:$0xff] %v1698
        %1707 = vst [vmem:[#allocation4 + $0x230] sm:$0xff] %v1699
        %1708 = vst [vmem:[#allocation4 + $0x238] sm:$0xff] %v1700
        %v1709 = vld [vmem:[%s6] sm:$0x3f]
        %v1710 = vld [vmem:[#allocation4] sm:$0xff]
        %v1711 = vld [vmem:[#allocation4 + $0x8] sm:$0xff]
        %v1712 = vld [vmem:[#allocation4 + $0x10] sm:$0xff]
        %v1713 = vld [vmem:[#allocation4 + $0x18] sm:$0xff]
        %v1714 = vld [vmem:[#allocation4 + $0x20] sm:$0xff]
        %v1715 = vld [vmem:[#allocation4 + $0x28] sm:$0xff]
        %v1716 = vld [vmem:[#allocation4 + $0x30] sm:$0xff]
        %v1717 = vld [vmem:[#allocation4 + $0x38] sm:$0xff]
        %v1718 = vld [vmem:[#allocation4 + $0x40] sm:$0xff]
        %v1719 = vld [vmem:[#allocation4 + $0x48] sm:$0xff]
        %v1720 = vld [vmem:[#allocation4 + $0x50] sm:$0xff]
        %v1721 = vld [vmem:[#allocation4 + $0x58] sm:$0xff]
        %v1722 = vld [vmem:[#allocation4 + $0x60] sm:$0xff]
        %v1723 = vld [vmem:[#allocation4 + $0x68] sm:$0xff]
        %v1724 = vld [vmem:[#allocation4 + $0x70] sm:$0xff]
        %v1725 = vld [vmem:[#allocation4 + $0x78] sm:$0xff]
        %v1726 = vld [vmem:[#allocation4 + $0x80] sm:$0xff]
        %v1727 = vld [vmem:[#allocation4 + $0x88] sm:$0xff]
        %v1728 = vld [vmem:[#allocation4 + $0x90] sm:$0xff]
        %v1729 = vld [vmem:[#allocation4 + $0x98] sm:$0xff]
        %v1730 = vld [vmem:[#allocation4 + $0xa0] sm:$0xff]
        %v1731 = vld [vmem:[#allocation4 + $0xa8] sm:$0xff]
        %v1732 = vld [vmem:[#allocation4 + $0xb0] sm:$0xff]
        %v1733 = vld [vmem:[#allocation4 + $0xb8] sm:$0xff]
        %v1734 = vld [vmem:[#allocation4 + $0xc0] sm:$0xff]
        %v1735 = vld [vmem:[#allocation4 + $0xc8] sm:$0xff]
        %v1736 = vld [vmem:[#allocation4 + $0xd0] sm:$0xff]
        %v1737 = vld [vmem:[#allocation4 + $0xd8] sm:$0xff]
        %v1738 = vld [vmem:[#allocation4 + $0xe0] sm:$0xff]
        %v1739 = vld [vmem:[#allocation4 + $0xe8] sm:$0xff]
        %v1740 = vld [vmem:[#allocation4 + $0xf0] sm:$0xff]
        %v1741 = vld [vmem:[#allocation4 + $0xf8] sm:$0xff]
        %v1742 = vld [vmem:[#allocation4 + $0x100] sm:$0xff]
        %v1743 = vld [vmem:[#allocation4 + $0x108] sm:$0xff]
        %v1744 = vld [vmem:[#allocation4 + $0x110] sm:$0xff]
        %v1745 = vld [vmem:[#allocation4 + $0x118] sm:$0xff]
        %v1746 = vld [vmem:[#allocation4 + $0x120] sm:$0xff]
        %v1747 = vld [vmem:[#allocation4 + $0x128] sm:$0xff]
        %v1748 = vld [vmem:[#allocation4 + $0x130] sm:$0xff]
        %v1749 = vld [vmem:[#allocation4 + $0x138] sm:$0xff]
        %v1750 = vld [vmem:[#allocation4 + $0x140] sm:$0xff]
        %v1751 = vld [vmem:[#allocation4 + $0x148] sm:$0xff]
        %v1752 = vld [vmem:[#allocation4 + $0x150] sm:$0xff]
        %v1753 = vld [vmem:[#allocation4 + $0x158] sm:$0xff]
        %v1754 = vld [vmem:[#allocation4 + $0x160] sm:$0xff]
        %v1755 = vld [vmem:[#allocation4 + $0x168] sm:$0xff]
        %v1756 = vld [vmem:[#allocation4 + $0x170] sm:$0xff]
        %v1757 = vld [vmem:[#allocation4 + $0x178] sm:$0xff]
        %v1758 = vld [vmem:[#allocation4 + $0x180] sm:$0xff]
        %v1759 = vld [vmem:[#allocation4 + $0x188] sm:$0xff]
        %v1760 = vld [vmem:[#allocation4 + $0x190] sm:$0xff]
        %v1761 = vld [vmem:[#allocation4 + $0x198] sm:$0xff]
        %v1762 = vld [vmem:[#allocation4 + $0x1a0] sm:$0xff]
        %v1763 = vld [vmem:[#allocation4 + $0x1a8] sm:$0xff]
        %v1764 = vld [vmem:[#allocation4 + $0x1b0] sm:$0xff]
        %v1765 = vld [vmem:[#allocation4 + $0x1b8] sm:$0xff]
        %v1766 = vld [vmem:[#allocation4 + $0x1c0] sm:$0xff]
        %v1767 = vld [vmem:[#allocation4 + $0x1c8] sm:$0xff]
        %v1768 = vld [vmem:[#allocation4 + $0x1d0] sm:$0xff]
        %v1769 = vld [vmem:[#allocation4 + $0x1d8] sm:$0xff]
        %v1770 = vld [vmem:[#allocation4 + $0x1e0] sm:$0xff]
        %v1771 = vld [vmem:[#allocation4 + $0x1e8] sm:$0xff]
        %v1772 = vld [vmem:[#allocation4 + $0x1f0] sm:$0xff]
        %v1773 = vld [vmem:[#allocation4 + $0x1f8] sm:$0xff]
        %v1774 = vld [vmem:[#allocation4 + $0x200] sm:$0xff]
        %v1775 = vld [vmem:[#allocation4 + $0x208] sm:$0xff]
        %v1776 = vld [vmem:[#allocation4 + $0x210] sm:$0xff]
        %v1777 = vld [vmem:[#allocation4 + $0x218] sm:$0xff]
        %v1778 = vld [vmem:[#allocation4 + $0x220] sm:$0xff]
        %v1779 = vld [vmem:[#allocation4 + $0x228] sm:$0xff]
        %v1780 = vld [vmem:[#allocation4 + $0x230] sm:$0xff]
        %v1781 = vld [vmem:[#allocation4 + $0x238] sm:$0xff]
        %v1782 = vld [vmem:[%s7] sm:$0x3]
        %1784 = vset.pattern.permute.xlu0 0
        %1785 = vperm.xlu0 %1784, %v1782
        %v1786 = vpop.permute.xlu0 %1785
        %v1789 = vcombine.high %v1709, %v1709
        %v1791 = vunpack.c.l.s4 1983009808
        %v1792 = vunpack.c.0.s8 %v1791
        %v1793 = vlaneseq
        %v1794 = vshrl.u32 %v1793, 7
        %v1795 = vsub.s32 %v1792, %v1794
        %v1796 = vrot.slane %v1709, %v1795
        %v1798 = vunpack.c.l.s4 1983009808
        %v1799 = vunpack.c.0.s8 %v1798
        %v1800 = vlaneseq
        %v1801 = vshrl.u32 %v1800, 7
        %v1802 = vsub.s32 %v1799, %v1801
        %v1803 = vrot.slane %v1789, %v1802
        %v1804 = vcombine.high %v1796, %v1796
        %vm1807 = vcmask 261120
        %v1808 = vsel %vm1807, %v1803, 0
        %1810 = vmatprep.subr.mxu0 %v1711
        %1811 = vmatpush1.msra.mxu0 %v1710
        %1812 = vmatprep.subr.mxu0 %v1713
        %1813 = vmatpush1.msra.mxu0 %v1712
        %1814 = vmatprep.subr.mxu0 %v1715
        %1815 = vmatpush1.msra.mxu0 %v1714
        %1816 = vmatprep.subr.mxu0 %v1717
        %1817 = vmatpush1.msra.mxu0 %v1716
        %1818 = vmatprep.subr.mxu0 %v1719
        %1819 = vmatpush1.msra.mxu0 %v1718
        %1820 = vmatprep.subr.mxu0 %v1721
        %1821 = vmatpush1.msra.mxu0 %v1720
        %1822 = vmatprep.subr.mxu0 %v1723
        %1823 = vmatpush1.msra.mxu0 %v1722
        %1824 = vmatprep.subr.mxu0 %v1725
        %1825 = vmatpush1.msra.mxu0 %v1724
        %1826 = vmatprep.subr.mxu0 %v1727
        %1827 = vmatpush1.msra.mxu0 %v1726
        %1828 = vmatprep.subr.mxu0 %v1729
        %1829 = vmatpush1.msra.mxu0 %v1728
        %1830 = vmatprep.subr.mxu0 %v1731
        %1831 = vmatpush1.msra.mxu0 %v1730
        %1832 = vmatprep.subr.mxu0 %v1733
        %1833 = vmatpush1.msra.mxu0 %v1732
        %1834 = vmatprep.subr.mxu0 %v1735
        %1835 = vmatpush1.msra.mxu0 %v1734
        %1836 = vmatprep.subr.mxu0 %v1737
        %1837 = vmatpush1.msra.mxu0 %v1736
        %1838 = vmatprep.subr.mxu0 %v1739
        %1839 = vmatpush1.msra.mxu0 %v1738
        %1840 = vmatprep.subr.mxu0 %v1741
        %1841 = vmatpush1.msra.mxu0 %v1740
        %1842 = vmatprep.subr.mxu0 %v1743
        %1843 = vmatpush1.msra.mxu0 %v1742
        %1844 = vmatprep.subr.mxu0 %v1745
        %1845 = vmatpush1.msra.mxu0 %v1744
        %1846 = vmatprep.subr.mxu0 %v1747
        %1847 = vmatpush1.msra.mxu0 %v1746
        %1848 = vmatprep.subr.mxu0 %v1749
        %1849 = vmatpush1.msra.mxu0 %v1748
        %1850 = vmatprep.subr.mxu0 %v1751
        %1851 = vmatpush1.msra.mxu0 %v1750
        %1852 = vmatprep.subr.mxu0 %v1753
        %1853 = vmatpush1.msra.mxu0 %v1752
        %1854 = vmatprep.subr.mxu0 %v1755
        %1855 = vmatpush1.msra.mxu0 %v1754
        %1856 = vmatprep.subr.mxu0 %v1757
        %1857 = vmatpush1.msra.mxu0 %v1756
        %1858 = vmatprep.subr.mxu0 %v1759
        %1859 = vmatpush1.msra.mxu0 %v1758
        %1860 = vmatprep.subr.mxu0 %v1761
        %1861 = vmatpush1.msra.mxu0 %v1760
        %1862 = vmatprep.subr.mxu0 %v1763
        %1863 = vmatpush1.msra.mxu0 %v1762
        %1864 = vmatprep.subr.mxu0 %v1765
        %1865 = vmatpush1.msra.mxu0 %v1764
        %1866 = vmatprep.subr.mxu0 %v1767
        %1867 = vmatpush1.msra.mxu0 %v1766
        %1868 = vmatprep.subr.mxu0 %v1769
        %1869 = vmatpush1.msra.mxu0 %v1768
        %1870 = vmatprep.subr.mxu0 %v1771
        %1871 = vmatpush1.msra.mxu0 %v1770
        %1872 = vmatprep.subr.mxu0 %v1773
        %1873 = vmatpush1.msra.mxu0 %v1772
        %1874 = vmatprep.mubr.f32.mxu0 %v1804
        %1875 = vmatmul.mubr.f32.gmra.mrb[0].mxu0 %v1796
        %v1876 = vpop.f32.mrb[0].mxu0
        %v1877 = vadd.f32 %v1786, %v1876
        %v1878 = vpop.f32.mrb[0].mxu0
        %v1879 = vadd.f32 %v1786, %v1878
        %1880 = vdwg.mxu0
        %1881 = vmatprep.subr.mxu0 %v1775
        %1882 = vmatpush1.msra.mxu0 %v1774
        %1883 = vmatprep.subr.mxu0 %v1777
        %1884 = vmatpush1.msra.mxu0 %v1776
        %1885 = vmatprep.subr.mxu0 %v1779
        %1886 = vmatpush1.msra.mxu0 %v1778
        %1887 = vmatprep.subr.mxu0 %v1781
        %1888 = vmatpush1.msra.mxu0 %v1780
        %1889 = vmatprep.subr.mxu0 0.0
        %1890 = vmatpush1.msra.mxu0 0.0
        %1891 = vmatprep.subr.mxu0 0.0
        %1892 = vmatpush1.msra.mxu0 0.0
        %1893 = vmatprep.subr.mxu0 0.0
        %1894 = vmatpush1.msra.mxu0 0.0
        %1895 = vmatprep.subr.mxu0 0.0
        %1896 = vmatpush1.msra.mxu0 0.0
        %1897 = vmatprep.subr.mxu0 0.0
        %1898 = vmatpush1.msra.mxu0 0.0
        %1899 = vmatprep.subr.mxu0 0.0
        %1900 = vmatpush1.msra.mxu0 0.0
        %1901 = vmatprep.subr.mxu0 0.0
        %1902 = vmatpush1.msra.mxu0 0.0
        %1903 = vmatprep.subr.mxu0 0.0
        %1904 = vmatpush1.msra.mxu0 0.0
        %1905 = vmatprep.subr.mxu0 0.0
        %1906 = vmatpush1.msra.mxu0 0.0
        %1907 = vmatprep.subr.mxu0 0.0
        %1908 = vmatpush1.msra.mxu0 0.0
        %1909 = vmatprep.subr.mxu0 0.0
        %1910 = vmatpush1.msra.mxu0 0.0
        %1911 = vmatprep.subr.mxu0 0.0
        %1912 = vmatpush1.msra.mxu0 0.0
        %1913 = vmatprep.subr.mxu0 0.0
        %1914 = vmatpush1.msra.mxu0 0.0
        %1915 = vmatprep.subr.mxu0 0.0
        %1916 = vmatpush1.msra.mxu0 0.0
        %1917 = vmatprep.subr.mxu0 0.0
        %1918 = vmatpush1.msra.mxu0 0.0
        %1919 = vmatprep.subr.mxu0 0.0
        %1920 = vmatpush1.msra.mxu0 0.0
        %1921 = vmatprep.subr.mxu0 0.0
        %1922 = vmatpush1.msra.mxu0 0.0
        %1923 = vmatprep.subr.mxu0 0.0
        %1924 = vmatpush1.msra.mxu0 0.0
        %1925 = vmatprep.subr.mxu0 0.0
        %1926 = vmatpush1.msra.mxu0 0.0
        %1927 = vmatprep.subr.mxu0 0.0
        %1928 = vmatpush1.msra.mxu0 0.0
        %1929 = vmatprep.subr.mxu0 0.0
        %1930 = vmatpush1.msra.mxu0 0.0
        %1931 = vmatprep.subr.mxu0 0.0
        %1932 = vmatpush1.msra.mxu0 0.0
        %1933 = vmatprep.subr.mxu0 0.0
        %1934 = vmatpush1.msra.mxu0 0.0
        %1935 = vmatprep.subr.mxu0 0.0
        %1936 = vmatpush1.msra.mxu0 0.0
        %1937 = vmatprep.subr.mxu0 0.0
        %1938 = vmatpush1.msra.mxu0 0.0
        %1939 = vmatprep.subr.mxu0 0.0
        %1940 = vmatpush1.msra.mxu0 0.0
        %1941 = vmatprep.subr.mxu0 0.0
        %1942 = vmatpush1.msra.mxu0 0.0
        %1943 = vmatprep.subr.mxu0 0.0
        %1944 = vmatpush1.msra.mxu0 0.0
        %1945 = vmatprep.mubr.f32.mxu0 0.0
        %1946 = vmatmul.mubr.f32.gmra.mrb[0].mxu0 %v1808
        %v1947 = vpop.f32.mrb[0].mxu0
        %v1948 = vadd.f32 %v1877, %v1947
        %v1949 = vpop.f32.mrb[0].mxu0
        %v1950 = vadd.f32 %v1879, %v1949
        %1951 = vdwg.mxu0
        %v1954 = vcombine.low %v1948, %v1950
        %v1956 = vunpack.c.l.s4 1983009808
        %v1957 = vunpack.c.0.s8 %v1956
        %v1958 = vlaneseq
        %v1959 = vshrl.u32 %v1958, 7
        %v1960 = vsub.s32 %v1957, %v1959
        %v1961 = vrot.slane %v1954, %v1960
        %1963 = vst [vmem:[%s350] sm:$0xf] %v1961
        %s1964 = sand.u32 %s207, 1
        %s1965 = scalar_lea.sflag [#allocation9], %s1964
        %s1966 = sand.u32 %s207, 1
        %s1967 = smul.addr %s1966, 4
        %s1968 = scalar_lea.vmem [#allocation13], %s1967
        // Predicated region
        $region65: #{tpu_custom_call.1} parent=51 // pred_check
          %p1969 = pneg %p217
        $region66: #{tpu_custom_call.1} parent=51 // pred_check_branch
          %1971 = sbr.rel (%p1969) target = $region68
        $region67: #{tpu_custom_call.1} parent=51 // pred_region
          %s1972 = smul.u32 2, %s26
          %s1974 = ssub.s32 64, 64
          %1975 = vsyncadd %s1965, %s1974
          %s1976 = smul.addr %s1972, 32
          %s1977 = scalar_lea.hbm %s8, %s1976
          %s1979 = sshll.u32 %s1968, 4
          %s1980 = int_to_ptr.vmem [resolvable:$true] %s1979
          %1982 = dma.vmem_to_hbm [thread:$0]  %s1980, 64, %s1977, %s1965
        $region68: #{tpu_custom_call.1} parent=51 // pred_fallthru
          _
      $region52: #{tpu_custom_call.1} parent=5 // pred_fallthru
        _
      %p1983 = scmp.le.s32.totalorder 2, %s21
      // Predicated region
      $region69: #{tpu_custom_call.1} parent=5 // pred_check
        %p1984 = pneg %p1983
      $region70: #{tpu_custom_call.1} parent=5 // pred_check_branch
        %1986 = sbr.rel (%p1984) target = $region72
      $region71: #{tpu_custom_call.1} parent=5 // pred_region
        %s1987 = ssub.s32 %s21, 2
        // Predicated region
        $region73: #{tpu_custom_call.1} parent=71 // pred_check
          %p1988 = pneg %p223
        $region74: #{tpu_custom_call.1} parent=71 // pred_check_branch
          %1990 = sbr.rel (%p1988) target = $region76
        $region75: #{tpu_custom_call.1} parent=71 // pred_region
          %s1991 = sand.u32 %s208, 1
          %s1992 = scalar_lea.sflag [#allocation9], %s1991
          %s1993 = sand.u32 %s208, 1
          %s1994 = smul.addr %s1993, 4
          %s1995 = scalar_lea.vmem [#allocation13], %s1994
          %1996 = dma.done %s1992, 64
        $region76: #{tpu_custom_call.1} parent=71 // pred_fallthru
          _
      $region72: #{tpu_custom_call.1} parent=5 // pred_fallthru
        _
    $region6: #{tpu_custom_call.1} parent=1 // loop_footer
      %s25 = sadd.s32 1, %s21
    $region7: #{tpu_custom_call.1} parent=1 // loop_footer_branch
      %20 = sbr.rel target = $region3
    $region8: #{tpu_custom_call.1} parent=1 // loop_exit
      _
    %1997 = vsyncpa [#allocation8], 1
    %s1998 = scalar_lea.sflag [#allocation8], 1
    %1999 = vsyncpa %s1998, 1
    %2000 = vsyncpa [#allocation11], 1
    %2001 = vsyncpa [#allocation9], 1
    %s2002 = scalar_lea.sflag [#allocation9], 1
    %2003 = vsyncpa %s2002, 1

</llo_original>
